<compile_context>
chip_gen: v7x
topology: tpu7x:2x2x1
jax: 0.10.0
libtpu: 0.0.40
codegen_flags: <defaults>
</compile_context>

<pallas_src>
import functools

import jax
import jax.numpy as jnp
import numpy as np
from jax.experimental import pallas as pl
from jax.experimental.pallas import tpu as pltpu


def _round_up(n, m):
    return ((n + m - 1) // m) * m


def gru_regressor_kernel(x_ref,        # (T*Bp, Hp)  all timesteps, flattened, padded
                         wi_ref,       # (Hp, 3Hp)   fused W_i^T  [r|z|n], gate blocks lane-aligned
                         wh_ref,       # (Hp, 3Hp)   fused W_h^T  [r|z|n]
                         bi_ref,       # (1, 3Hp)    [b_ir+b_hr | b_iz+b_hz | b_in]
                         bhn_ref,      # (1, Hp)     b_hn (n-gate only)
                         w1_ref, b1_ref,   # linear1: (Hp, Hp) transposed, (1, Hp)
                         w2_ref, b2_ref,   # output:  (Hp, Op) transposed, (1, Op)
                         out_ref,      # (Bp, Op)    lane-dense padded output
                         *, T, B, H):
    # B == Bp (multiple of 8), H == Hp (multiple of 128): every slice below is tile-aligned.

    # Hoisted input projection: ONE big MXU matmul covering every timestep.
    xproj = (jnp.dot(x_ref[...], wi_ref[...], preferred_element_type=jnp.float32)
             + bi_ref[...])                                   # (T*Bp, 3Hp)

    wh = wh_ref[...]
    bhn = bhn_ref[...]

    # Recurrence: T is small & static -> fully unrolled, h lives in vregs; exactly one
    # (Bp,Hp)x(Hp,3Hp) MXU push + one fused sigmoid + one tanh per step on the serial chain.
    h = jnp.zeros((B, H), jnp.float32)
    for t in range(T):
        xp = xproj[t * B:(t + 1) * B, :]                      # (Bp, 3Hp), sublane-aligned slice
        hp = jnp.dot(h, wh, preferred_element_type=jnp.float32)   # (Bp, 3Hp)
        rz = jax.nn.sigmoid(xp[:, :2 * H] + hp[:, :2 * H])    # one EUP push for r and z
        r = rz[:, :H]
        z = rz[:, H:]
        n = jnp.tanh(xp[:, 2 * H:] + r * (hp[:, 2 * H:] + bhn))
        h = n + z * (h - n)                                   # == (1-z)*n + z*h, 3 VALU ops

    # Head: last_rec = h_T, ReLU(linear1) -> output (lane-dense padded store).
    hid = jnp.maximum(
        jnp.dot(h, w1_ref[...], preferred_element_type=jnp.float32) + b1_ref[...], 0.0)
    out_ref[...] = (jnp.dot(hid, w2_ref[...], preferred_element_type=jnp.float32)
                    + b2_ref[...]).astype(out_ref.dtype)


def _pad2(a, rows, cols):
    return jnp.pad(a, ((0, rows - a.shape[0]), (0, cols - a.shape[1])))


def _prepare_padded_params(params, Hp, Op):
    """Pad per-gate params to lane-aligned tiles and fuse into MXU-friendly matrices."""
    # Each gate block occupies its own (Hp, Hp) tile -> gate offsets 0 / Hp / 2*Hp are
    # multiples of 128, so all gate slices in the kernel are lane-tile aligned.
    wi_cat = jnp.concatenate([_pad2(params["wir_t"], Hp, Hp),
                              _pad2(params["wiz_t"], Hp, Hp),
                              _pad2(params["win_t"], Hp, Hp)], axis=1)
    wh_cat = jnp.concatenate([_pad2(params["whr_t"], Hp, Hp),
                              _pad2(params["whz_t"], Hp, Hp),
                              _pad2(params["whn_t"], Hp, Hp)], axis=1)
    bi_comb = jnp.concatenate([_pad2(params["bir"] + params["bhr"], 1, Hp),
                               _pad2(params["biz"] + params["bhz"], 1, Hp),
                               _pad2(params["bin"], 1, Hp)], axis=1)
    bhn = _pad2(params["bhn"], 1, Hp)
    w1 = _pad2(params["w1_t"], Hp, Hp)
    b1 = _pad2(params["b1"], 1, Hp)
    w2 = _pad2(params["w2_t"], Hp, Op)
    b2 = _pad2(params["b2"], 1, Op)
    return wi_cat, wh_cat, bi_comb, bhn, w1, b1, w2, b2


def physical_value_regressor(x, params):
    """x: (T, B, H) float32 (seq_len, batch, n_inputs). Returns (B, n_output) float32."""
    T, B, H = x.shape
    O = params["w2_t"].shape[1]

    Bp = _round_up(B, 8)        # sublane-aligned per-timestep slices
    Hp = _round_up(H, 128)      # lane-aligned gate blocks
    Op = _round_up(O, 128)      # lane-dense output store

    wi_cat, wh_cat, bi_comb, bhn, w1, b1, w2, b2 = _prepare_padded_params(params, Hp, Op)

    # Pad batch & feature dims with zeros (independent rows / zero-weighted lanes), flatten time.
    x_pad = jnp.pad(x, ((0, 0), (0, Bp - B), (0, Hp - H)))
    x_flat = x_pad.reshape(T * Bp, Hp)                         # wrapper-side layout plumbing

    kernel = functools.partial(gru_regressor_kernel, T=T, B=Bp, H=Hp)
    vmem = pl.BlockSpec(memory_space=pltpu.MemorySpace.VMEM)   # whole array resident in VMEM

    out = pl.pallas_call(
        kernel,
        out_shape=jax.ShapeDtypeStruct((Bp, Op), jnp.float32),
        in_specs=[vmem] * 9,
        out_specs=vmem,
    )(
        x_flat,
        wi_cat, wh_cat, bi_comb, bhn,
        w1, b1, w2, b2,
    )
    return out[:B, :O]                                         # strip padding


def init_params(key, n_inputs, n_output):
    """Deterministic init mirroring PyTorch shapes (uniform(-1/sqrt(H), 1/sqrt(H)))."""
    H, O = n_inputs, n_output
    k = 1.0 / np.sqrt(H)
    keys = jax.random.split(key, 20)
    u = lambda kk, shape: jax.random.uniform(kk, shape, jnp.float32, -k, k)

    # GRU weights, PyTorch layout: weight_ih_l0 (3H, H) ordered [r, z, n]; store transposed per gate.
    w_ih = u(keys[0], (3 * H, H))
    w_hh = u(keys[1], (3 * H, H))
    b_ih = u(keys[2], (3 * H,))
    b_hh = u(keys[3], (3 * H,))
    params = {
        "wir_t": w_ih[0:H].T, "wiz_t": w_ih[H:2 * H].T, "win_t": w_ih[2 * H:3 * H].T,
        "whr_t": w_hh[0:H].T, "whz_t": w_hh[H:2 * H].T, "whn_t": w_hh[2 * H:3 * H].T,
        "bir": b_ih[0:H].reshape(1, H), "biz": b_ih[H:2 * H].reshape(1, H),
        "bin": b_ih[2 * H:3 * H].reshape(1, H),
        "bhr": b_hh[0:H].reshape(1, H), "bhz": b_hh[H:2 * H].reshape(1, H),
        "bhn": b_hh[2 * H:3 * H].reshape(1, H),
        # linear1: (H, H), bias (H,)
        "w1_t": u(keys[4], (H, H)).T, "b1": u(keys[5], (H,)).reshape(1, H),
        # output: (O, H), bias (O,)
        "w2_t": u(keys[6], (O, H)).T, "b2": u(keys[7], (O,)).reshape(1, O),
    }
    return params


def reference_forward(x, params):
    """Pure-JAX reference of the PyTorch forward (per-gate, unfused), for validation."""
    T, B, H = x.shape
    h = jnp.zeros((B, H), jnp.float32)
    for t in range(T):
        x_t = x[t]
        r = jax.nn.sigmoid(x_t @ params["wir_t"] + params["bir"]
                           + h @ params["whr_t"] + params["bhr"])
        z = jax.nn.sigmoid(x_t @ params["wiz_t"] + params["biz"]
                           + h @ params["whz_t"] + params["bhz"])
        n = jnp.tanh(x_t @ params["win_t"] + params["bin"]
                     + r * (h @ params["whn_t"] + params["bhn"]))
        h = (1.0 - z) * n + z * h
    hid = jnp.maximum(h @ params["w1_t"] + params["b1"], 0.0)
    return hid @ params["w2_t"] + params["b2"]


if __name__ == "__main__":
    T, B, n_inputs, n_output = 8, 4, 32, 8          # x: (seq, batch, n_inputs)
    key = jax.random.PRNGKey(0)
    k_x, k_p = jax.random.split(key)
    x = jax.random.normal(k_x, (T, B, n_inputs), jnp.float32)
    params = init_params(k_p, n_inputs, n_output)

    out = jax.block_until_ready(physical_value_regressor(x, params))
    ref = jax.block_until_ready(reference_forward(x, params))
    np.testing.assert_allclose(np.asarray(out), np.asarray(ref), rtol=1e-4, atol=1e-4)

    print("KERNEL_OK")
</pallas_src>

<mosaic_0001>
module attributes {stable_mosaic.version = 11 : i64} {
  func.func @gru_regressor_kernel(%arg0: memref<64x128xf32, #tpu.memory_space<vmem>>, %arg1: memref<128x384xf32, #tpu.memory_space<vmem>>, %arg2: memref<128x384xf32, #tpu.memory_space<vmem>>, %arg3: memref<1x384xf32, #tpu.memory_space<vmem>>, %arg4: memref<1x128xf32, #tpu.memory_space<vmem>>, %arg5: memref<128x128xf32, #tpu.memory_space<vmem>>, %arg6: memref<1x128xf32, #tpu.memory_space<vmem>>, %arg7: memref<128x128xf32, #tpu.memory_space<vmem>>, %arg8: memref<1x128xf32, #tpu.memory_space<vmem>>, %arg9: memref<8x128xf32, #tpu.memory_space<vmem>>) attributes {dimension_semantics = [], scalar_prefetch = 0 : i64, scratch_operands = 0 : i64, tpu.core_type = #tpu.core_type<tc>} {
    %c0 = arith.constant 0 : index
    %c0_0 = arith.constant 0 : index
    %0 = vector.load %arg0[%c0, %c0_0] : memref<64x128xf32, #tpu.memory_space<vmem>>, vector<64x128xf32>
    %c0_1 = arith.constant 0 : index
    %c0_2 = arith.constant 0 : index
    %1 = vector.load %arg1[%c0_1, %c0_2] : memref<128x384xf32, #tpu.memory_space<vmem>>, vector<128x384xf32>
    %cst = arith.constant dense<0.000000e+00> : vector<64x384xf32>
    %2 = tpu.matmul %0, %1, %cst {dimension_numbers = #tpu.dot_dimension_numbers<[1], [0], [0], [1], [0, 0, 1, 1], [], []>} : vector<64x128xf32>, vector<128x384xf32>, vector<64x384xf32> -> vector<64x384xf32>
    %c0_3 = arith.constant 0 : index
    %c0_4 = arith.constant 0 : index
    %3 = vector.load %arg3[%c0_3, %c0_4] : memref<1x384xf32, #tpu.memory_space<vmem>>, vector<1x384xf32>
    %4 = vector.broadcast %3 : vector<1x384xf32> to vector<64x384xf32>
    %5 = arith.addf %2, %4 : vector<64x384xf32>
    %c0_5 = arith.constant 0 : index
    %c0_6 = arith.constant 0 : index
    %6 = vector.load %arg2[%c0_5, %c0_6] : memref<128x384xf32, #tpu.memory_space<vmem>>, vector<128x384xf32>
    %c0_7 = arith.constant 0 : index
    %c0_8 = arith.constant 0 : index
    %7 = vector.load %arg4[%c0_7, %c0_8] : memref<1x128xf32, #tpu.memory_space<vmem>>, vector<1x128xf32>
    %cst_9 = arith.constant 0.000000e+00 : f32
    %8 = vector.broadcast %cst_9 : f32 to vector<8x128xf32>
    %9 = vector.extract_strided_slice %5 {offsets = [0, 0], sizes = [8, 384], strides = [1, 1]} : vector<64x384xf32> to vector<8x384xf32>
    %cst_10 = arith.constant dense<0.000000e+00> : vector<8x384xf32>
    %10 = tpu.matmul %8, %6, %cst_10 {dimension_numbers = #tpu.dot_dimension_numbers<[1], [0], [0], [1], [0, 0, 1, 1], [], []>} : vector<8x128xf32>, vector<128x384xf32>, vector<8x384xf32> -> vector<8x384xf32>
    %11 = vector.extract_strided_slice %9 {offsets = [0, 0], sizes = [8, 256], strides = [1, 1]} : vector<8x384xf32> to vector<8x256xf32>
    %12 = vector.extract_strided_slice %10 {offsets = [0, 0], sizes = [8, 256], strides = [1, 1]} : vector<8x384xf32> to vector<8x256xf32>
    %13 = arith.addf %11, %12 : vector<8x256xf32>
    %14 = arith.negf %13 : vector<8x256xf32>
    %15 = math.exp %14 : vector<8x256xf32>
    %cst_11 = arith.constant 1.000000e+00 : f32
    %16 = vector.broadcast %cst_11 : f32 to vector<8x256xf32>
    %17 = arith.addf %16, %15 : vector<8x256xf32>
    %18 = arith.divf %16, %17 : vector<8x256xf32>
    %19 = vector.extract_strided_slice %18 {offsets = [0, 0], sizes = [8, 128], strides = [1, 1]} : vector<8x256xf32> to vector<8x128xf32>
    %20 = vector.extract_strided_slice %18 {offsets = [0, 128], sizes = [8, 128], strides = [1, 1]} : vector<8x256xf32> to vector<8x128xf32>
    %21 = vector.extract_strided_slice %9 {offsets = [0, 256], sizes = [8, 128], strides = [1, 1]} : vector<8x384xf32> to vector<8x128xf32>
    %22 = vector.extract_strided_slice %10 {offsets = [0, 256], sizes = [8, 128], strides = [1, 1]} : vector<8x384xf32> to vector<8x128xf32>
    %23 = vector.broadcast %7 : vector<1x128xf32> to vector<8x128xf32>
    %24 = arith.addf %22, %23 : vector<8x128xf32>
    %25 = arith.mulf %19, %24 : vector<8x128xf32>
    %26 = arith.addf %21, %25 : vector<8x128xf32>
    %27 = math.tanh %26 : vector<8x128xf32>
    %28 = arith.subf %8, %27 : vector<8x128xf32>
    %29 = arith.mulf %20, %28 : vector<8x128xf32>
    %30 = arith.addf %27, %29 : vector<8x128xf32>
    %31 = vector.extract_strided_slice %5 {offsets = [8, 0], sizes = [8, 384], strides = [1, 1]} : vector<64x384xf32> to vector<8x384xf32>
    %cst_12 = arith.constant dense<0.000000e+00> : vector<8x384xf32>
    %32 = tpu.matmul %30, %6, %cst_12 {dimension_numbers = #tpu.dot_dimension_numbers<[1], [0], [0], [1], [0, 0, 1, 1], [], []>} : vector<8x128xf32>, vector<128x384xf32>, vector<8x384xf32> -> vector<8x384xf32>
    %33 = vector.extract_strided_slice %31 {offsets = [0, 0], sizes = [8, 256], strides = [1, 1]} : vector<8x384xf32> to vector<8x256xf32>
    %34 = vector.extract_strided_slice %32 {offsets = [0, 0], sizes = [8, 256], strides = [1, 1]} : vector<8x384xf32> to vector<8x256xf32>
    %35 = arith.addf %33, %34 : vector<8x256xf32>
    %36 = arith.negf %35 : vector<8x256xf32>
    %37 = math.exp %36 : vector<8x256xf32>
    %cst_13 = arith.constant 1.000000e+00 : f32
    %38 = vector.broadcast %cst_13 : f32 to vector<8x256xf32>
    %39 = arith.addf %38, %37 : vector<8x256xf32>
    %40 = arith.divf %38, %39 : vector<8x256xf32>
    %41 = vector.extract_strided_slice %40 {offsets = [0, 0], sizes = [8, 128], strides = [1, 1]} : vector<8x256xf32> to vector<8x128xf32>
    %42 = vector.extract_strided_slice %40 {offsets = [0, 128], sizes = [8, 128], strides = [1, 1]} : vector<8x256xf32> to vector<8x128xf32>
    %43 = vector.extract_strided_slice %31 {offsets = [0, 256], sizes = [8, 128], strides = [1, 1]} : vector<8x384xf32> to vector<8x128xf32>
    %44 = vector.extract_strided_slice %32 {offsets = [0, 256], sizes = [8, 128], strides = [1, 1]} : vector<8x384xf32> to vector<8x128xf32>
    %45 = vector.broadcast %7 : vector<1x128xf32> to vector<8x128xf32>
    %46 = arith.addf %44, %45 : vector<8x128xf32>
    %47 = arith.mulf %41, %46 : vector<8x128xf32>
    %48 = arith.addf %43, %47 : vector<8x128xf32>
    %49 = math.tanh %48 : vector<8x128xf32>
    %50 = arith.subf %30, %49 : vector<8x128xf32>
    %51 = arith.mulf %42, %50 : vector<8x128xf32>
    %52 = arith.addf %49, %51 : vector<8x128xf32>
    %53 = vector.extract_strided_slice %5 {offsets = [16, 0], sizes = [8, 384], strides = [1, 1]} : vector<64x384xf32> to vector<8x384xf32>
    %cst_14 = arith.constant dense<0.000000e+00> : vector<8x384xf32>
    %54 = tpu.matmul %52, %6, %cst_14 {dimension_numbers = #tpu.dot_dimension_numbers<[1], [0], [0], [1], [0, 0, 1, 1], [], []>} : vector<8x128xf32>, vector<128x384xf32>, vector<8x384xf32> -> vector<8x384xf32>
    %55 = vector.extract_strided_slice %53 {offsets = [0, 0], sizes = [8, 256], strides = [1, 1]} : vector<8x384xf32> to vector<8x256xf32>
    %56 = vector.extract_strided_slice %54 {offsets = [0, 0], sizes = [8, 256], strides = [1, 1]} : vector<8x384xf32> to vector<8x256xf32>
    %57 = arith.addf %55, %56 : vector<8x256xf32>
    %58 = arith.negf %57 : vector<8x256xf32>
    %59 = math.exp %58 : vector<8x256xf32>
    %cst_15 = arith.constant 1.000000e+00 : f32
    %60 = vector.broadcast %cst_15 : f32 to vector<8x256xf32>
    %61 = arith.addf %60, %59 : vector<8x256xf32>
    %62 = arith.divf %60, %61 : vector<8x256xf32>
    %63 = vector.extract_strided_slice %62 {offsets = [0, 0], sizes = [8, 128], strides = [1, 1]} : vector<8x256xf32> to vector<8x128xf32>
    %64 = vector.extract_strided_slice %62 {offsets = [0, 128], sizes = [8, 128], strides = [1, 1]} : vector<8x256xf32> to vector<8x128xf32>
    %65 = vector.extract_strided_slice %53 {offsets = [0, 256], sizes = [8, 128], strides = [1, 1]} : vector<8x384xf32> to vector<8x128xf32>
    %66 = vector.extract_strided_slice %54 {offsets = [0, 256], sizes = [8, 128], strides = [1, 1]} : vector<8x384xf32> to vector<8x128xf32>
    %67 = vector.broadcast %7 : vector<1x128xf32> to vector<8x128xf32>
    %68 = arith.addf %66, %67 : vector<8x128xf32>
    %69 = arith.mulf %63, %68 : vector<8x128xf32>
    %70 = arith.addf %65, %69 : vector<8x128xf32>
    %71 = math.tanh %70 : vector<8x128xf32>
    %72 = arith.subf %52, %71 : vector<8x128xf32>
    %73 = arith.mulf %64, %72 : vector<8x128xf32>
    %74 = arith.addf %71, %73 : vector<8x128xf32>
    %75 = vector.extract_strided_slice %5 {offsets = [24, 0], sizes = [8, 384], strides = [1, 1]} : vector<64x384xf32> to vector<8x384xf32>
    %cst_16 = arith.constant dense<0.000000e+00> : vector<8x384xf32>
    %76 = tpu.matmul %74, %6, %cst_16 {dimension_numbers = #tpu.dot_dimension_numbers<[1], [0], [0], [1], [0, 0, 1, 1], [], []>} : vector<8x128xf32>, vector<128x384xf32>, vector<8x384xf32> -> vector<8x384xf32>
    %77 = vector.extract_strided_slice %75 {offsets = [0, 0], sizes = [8, 256], strides = [1, 1]} : vector<8x384xf32> to vector<8x256xf32>
    %78 = vector.extract_strided_slice %76 {offsets = [0, 0], sizes = [8, 256], strides = [1, 1]} : vector<8x384xf32> to vector<8x256xf32>
    %79 = arith.addf %77, %78 : vector<8x256xf32>
    %80 = arith.negf %79 : vector<8x256xf32>
    %81 = math.exp %80 : vector<8x256xf32>
    %cst_17 = arith.constant 1.000000e+00 : f32
    %82 = vector.broadcast %cst_17 : f32 to vector<8x256xf32>
    %83 = arith.addf %82, %81 : vector<8x256xf32>
    %84 = arith.divf %82, %83 : vector<8x256xf32>
    %85 = vector.extract_strided_slice %84 {offsets = [0, 0], sizes = [8, 128], strides = [1, 1]} : vector<8x256xf32> to vector<8x128xf32>
    %86 = vector.extract_strided_slice %84 {offsets = [0, 128], sizes = [8, 128], strides = [1, 1]} : vector<8x256xf32> to vector<8x128xf32>
    %87 = vector.extract_strided_slice %75 {offsets = [0, 256], sizes = [8, 128], strides = [1, 1]} : vector<8x384xf32> to vector<8x128xf32>
    %88 = vector.extract_strided_slice %76 {offsets = [0, 256], sizes = [8, 128], strides = [1, 1]} : vector<8x384xf32> to vector<8x128xf32>
    %89 = vector.broadcast %7 : vector<1x128xf32> to vector<8x128xf32>
    %90 = arith.addf %88, %89 : vector<8x128xf32>
    %91 = arith.mulf %85, %90 : vector<8x128xf32>
    %92 = arith.addf %87, %91 : vector<8x128xf32>
    %93 = math.tanh %92 : vector<8x128xf32>
    %94 = arith.subf %74, %93 : vector<8x128xf32>
    %95 = arith.mulf %86, %94 : vector<8x128xf32>
    %96 = arith.addf %93, %95 : vector<8x128xf32>
    %97 = vector.extract_strided_slice %5 {offsets = [32, 0], sizes = [8, 384], strides = [1, 1]} : vector<64x384xf32> to vector<8x384xf32>
    %cst_18 = arith.constant dense<0.000000e+00> : vector<8x384xf32>
    %98 = tpu.matmul %96, %6, %cst_18 {dimension_numbers = #tpu.dot_dimension_numbers<[1], [0], [0], [1], [0, 0, 1, 1], [], []>} : vector<8x128xf32>, vector<128x384xf32>, vector<8x384xf32> -> vector<8x384xf32>
    %99 = vector.extract_strided_slice %97 {offsets = [0, 0], sizes = [8, 256], strides = [1, 1]} : vector<8x384xf32> to vector<8x256xf32>
    %100 = vector.extract_strided_slice %98 {offsets = [0, 0], sizes = [8, 256], strides = [1, 1]} : vector<8x384xf32> to vector<8x256xf32>
    %101 = arith.addf %99, %100 : vector<8x256xf32>
    %102 = arith.negf %101 : vector<8x256xf32>
    %103 = math.exp %102 : vector<8x256xf32>
    %cst_19 = arith.constant 1.000000e+00 : f32
    %104 = vector.broadcast %cst_19 : f32 to vector<8x256xf32>
    %105 = arith.addf %104, %103 : vector<8x256xf32>
    %106 = arith.divf %104, %105 : vector<8x256xf32>
    %107 = vector.extract_strided_slice %106 {offsets = [0, 0], sizes = [8, 128], strides = [1, 1]} : vector<8x256xf32> to vector<8x128xf32>
    %108 = vector.extract_strided_slice %106 {offsets = [0, 128], sizes = [8, 128], strides = [1, 1]} : vector<8x256xf32> to vector<8x128xf32>
    %109 = vector.extract_strided_slice %97 {offsets = [0, 256], sizes = [8, 128], strides = [1, 1]} : vector<8x384xf32> to vector<8x128xf32>
    %110 = vector.extract_strided_slice %98 {offsets = [0, 256], sizes = [8, 128], strides = [1, 1]} : vector<8x384xf32> to vector<8x128xf32>
    %111 = vector.broadcast %7 : vector<1x128xf32> to vector<8x128xf32>
    %112 = arith.addf %110, %111 : vector<8x128xf32>
    %113 = arith.mulf %107, %112 : vector<8x128xf32>
    %114 = arith.addf %109, %113 : vector<8x128xf32>
    %115 = math.tanh %114 : vector<8x128xf32>
    %116 = arith.subf %96, %115 : vector<8x128xf32>
    %117 = arith.mulf %108, %116 : vector<8x128xf32>
    %118 = arith.addf %115, %117 : vector<8x128xf32>
    %119 = vector.extract_strided_slice %5 {offsets = [40, 0], sizes = [8, 384], strides = [1, 1]} : vector<64x384xf32> to vector<8x384xf32>
    %cst_20 = arith.constant dense<0.000000e+00> : vector<8x384xf32>
    %120 = tpu.matmul %118, %6, %cst_20 {dimension_numbers = #tpu.dot_dimension_numbers<[1], [0], [0], [1], [0, 0, 1, 1], [], []>} : vector<8x128xf32>, vector<128x384xf32>, vector<8x384xf32> -> vector<8x384xf32>
    %121 = vector.extract_strided_slice %119 {offsets = [0, 0], sizes = [8, 256], strides = [1, 1]} : vector<8x384xf32> to vector<8x256xf32>
    %122 = vector.extract_strided_slice %120 {offsets = [0, 0], sizes = [8, 256], strides = [1, 1]} : vector<8x384xf32> to vector<8x256xf32>
    %123 = arith.addf %121, %122 : vector<8x256xf32>
    %124 = arith.negf %123 : vector<8x256xf32>
    %125 = math.exp %124 : vector<8x256xf32>
    %cst_21 = arith.constant 1.000000e+00 : f32
    %126 = vector.broadcast %cst_21 : f32 to vector<8x256xf32>
    %127 = arith.addf %126, %125 : vector<8x256xf32>
    %128 = arith.divf %126, %127 : vector<8x256xf32>
    %129 = vector.extract_strided_slice %128 {offsets = [0, 0], sizes = [8, 128], strides = [1, 1]} : vector<8x256xf32> to vector<8x128xf32>
    %130 = vector.extract_strided_slice %128 {offsets = [0, 128], sizes = [8, 128], strides = [1, 1]} : vector<8x256xf32> to vector<8x128xf32>
    %131 = vector.extract_strided_slice %119 {offsets = [0, 256], sizes = [8, 128], strides = [1, 1]} : vector<8x384xf32> to vector<8x128xf32>
    %132 = vector.extract_strided_slice %120 {offsets = [0, 256], sizes = [8, 128], strides = [1, 1]} : vector<8x384xf32> to vector<8x128xf32>
    %133 = vector.broadcast %7 : vector<1x128xf32> to vector<8x128xf32>
    %134 = arith.addf %132, %133 : vector<8x128xf32>
    %135 = arith.mulf %129, %134 : vector<8x128xf32>
    %136 = arith.addf %131, %135 : vector<8x128xf32>
    %137 = math.tanh %136 : vector<8x128xf32>
    %138 = arith.subf %118, %137 : vector<8x128xf32>
    %139 = arith.mulf %130, %138 : vector<8x128xf32>
    %140 = arith.addf %137, %139 : vector<8x128xf32>
    %141 = vector.extract_strided_slice %5 {offsets = [48, 0], sizes = [8, 384], strides = [1, 1]} : vector<64x384xf32> to vector<8x384xf32>
    %cst_22 = arith.constant dense<0.000000e+00> : vector<8x384xf32>
    %142 = tpu.matmul %140, %6, %cst_22 {dimension_numbers = #tpu.dot_dimension_numbers<[1], [0], [0], [1], [0, 0, 1, 1], [], []>} : vector<8x128xf32>, vector<128x384xf32>, vector<8x384xf32> -> vector<8x384xf32>
    %143 = vector.extract_strided_slice %141 {offsets = [0, 0], sizes = [8, 256], strides = [1, 1]} : vector<8x384xf32> to vector<8x256xf32>
    %144 = vector.extract_strided_slice %142 {offsets = [0, 0], sizes = [8, 256], strides = [1, 1]} : vector<8x384xf32> to vector<8x256xf32>
    %145 = arith.addf %143, %144 : vector<8x256xf32>
    %146 = arith.negf %145 : vector<8x256xf32>
    %147 = math.exp %146 : vector<8x256xf32>
    %cst_23 = arith.constant 1.000000e+00 : f32
    %148 = vector.broadcast %cst_23 : f32 to vector<8x256xf32>
    %149 = arith.addf %148, %147 : vector<8x256xf32>
    %150 = arith.divf %148, %149 : vector<8x256xf32>
    %151 = vector.extract_strided_slice %150 {offsets = [0, 0], sizes = [8, 128], strides = [1, 1]} : vector<8x256xf32> to vector<8x128xf32>
    %152 = vector.extract_strided_slice %150 {offsets = [0, 128], sizes = [8, 128], strides = [1, 1]} : vector<8x256xf32> to vector<8x128xf32>
    %153 = vector.extract_strided_slice %141 {offsets = [0, 256], sizes = [8, 128], strides = [1, 1]} : vector<8x384xf32> to vector<8x128xf32>
    %154 = vector.extract_strided_slice %142 {offsets = [0, 256], sizes = [8, 128], strides = [1, 1]} : vector<8x384xf32> to vector<8x128xf32>
    %155 = vector.broadcast %7 : vector<1x128xf32> to vector<8x128xf32>
    %156 = arith.addf %154, %155 : vector<8x128xf32>
    %157 = arith.mulf %151, %156 : vector<8x128xf32>
    %158 = arith.addf %153, %157 : vector<8x128xf32>
    %159 = math.tanh %158 : vector<8x128xf32>
    %160 = arith.subf %140, %159 : vector<8x128xf32>
    %161 = arith.mulf %152, %160 : vector<8x128xf32>
    %162 = arith.addf %159, %161 : vector<8x128xf32>
    %163 = vector.extract_strided_slice %5 {offsets = [56, 0], sizes = [8, 384], strides = [1, 1]} : vector<64x384xf32> to vector<8x384xf32>
    %cst_24 = arith.constant dense<0.000000e+00> : vector<8x384xf32>
    %164 = tpu.matmul %162, %6, %cst_24 {dimension_numbers = #tpu.dot_dimension_numbers<[1], [0], [0], [1], [0, 0, 1, 1], [], []>} : vector<8x128xf32>, vector<128x384xf32>, vector<8x384xf32> -> vector<8x384xf32>
    %165 = vector.extract_strided_slice %163 {offsets = [0, 0], sizes = [8, 256], strides = [1, 1]} : vector<8x384xf32> to vector<8x256xf32>
    %166 = vector.extract_strided_slice %164 {offsets = [0, 0], sizes = [8, 256], strides = [1, 1]} : vector<8x384xf32> to vector<8x256xf32>
    %167 = arith.addf %165, %166 : vector<8x256xf32>
    %168 = arith.negf %167 : vector<8x256xf32>
    %169 = math.exp %168 : vector<8x256xf32>
    %cst_25 = arith.constant 1.000000e+00 : f32
    %170 = vector.broadcast %cst_25 : f32 to vector<8x256xf32>
    %171 = arith.addf %170, %169 : vector<8x256xf32>
    %172 = arith.divf %170, %171 : vector<8x256xf32>
    %173 = vector.extract_strided_slice %172 {offsets = [0, 0], sizes = [8, 128], strides = [1, 1]} : vector<8x256xf32> to vector<8x128xf32>
    %174 = vector.extract_strided_slice %172 {offsets = [0, 128], sizes = [8, 128], strides = [1, 1]} : vector<8x256xf32> to vector<8x128xf32>
    %175 = vector.extract_strided_slice %163 {offsets = [0, 256], sizes = [8, 128], strides = [1, 1]} : vector<8x384xf32> to vector<8x128xf32>
    %176 = vector.extract_strided_slice %164 {offsets = [0, 256], sizes = [8, 128], strides = [1, 1]} : vector<8x384xf32> to vector<8x128xf32>
    %177 = vector.broadcast %7 : vector<1x128xf32> to vector<8x128xf32>
    %178 = arith.addf %176, %177 : vector<8x128xf32>
    %179 = arith.mulf %173, %178 : vector<8x128xf32>
    %180 = arith.addf %175, %179 : vector<8x128xf32>
    %181 = math.tanh %180 : vector<8x128xf32>
    %182 = arith.subf %162, %181 : vector<8x128xf32>
    %183 = arith.mulf %174, %182 : vector<8x128xf32>
    %184 = arith.addf %181, %183 : vector<8x128xf32>
    %c0_26 = arith.constant 0 : index
    %c0_27 = arith.constant 0 : index
    %185 = vector.load %arg5[%c0_26, %c0_27] : memref<128x128xf32, #tpu.memory_space<vmem>>, vector<128x128xf32>
    %cst_28 = arith.constant dense<0.000000e+00> : vector<8x128xf32>
    %186 = tpu.matmul %184, %185, %cst_28 {dimension_numbers = #tpu.dot_dimension_numbers<[1], [0], [0], [1], [0, 0, 1, 1], [], []>} : vector<8x128xf32>, vector<128x128xf32>, vector<8x128xf32> -> vector<8x128xf32>
    %c0_29 = arith.constant 0 : index
    %c0_30 = arith.constant 0 : index
    %187 = vector.load %arg6[%c0_29, %c0_30] : memref<1x128xf32, #tpu.memory_space<vmem>>, vector<1x128xf32>
    %188 = vector.broadcast %187 : vector<1x128xf32> to vector<8x128xf32>
    %189 = arith.addf %186, %188 : vector<8x128xf32>
    %cst_31 = arith.constant 0.000000e+00 : f32
    %190 = vector.broadcast %cst_31 : f32 to vector<8x128xf32>
    %191 = arith.maximumf %189, %190 : vector<8x128xf32>
    %c0_32 = arith.constant 0 : index
    %c0_33 = arith.constant 0 : index
    %192 = vector.load %arg7[%c0_32, %c0_33] : memref<128x128xf32, #tpu.memory_space<vmem>>, vector<128x128xf32>
    %cst_34 = arith.constant dense<0.000000e+00> : vector<8x128xf32>
    %193 = tpu.matmul %191, %192, %cst_34 {dimension_numbers = #tpu.dot_dimension_numbers<[1], [0], [0], [1], [0, 0, 1, 1], [], []>} : vector<8x128xf32>, vector<128x128xf32>, vector<8x128xf32> -> vector<8x128xf32>
    %c0_35 = arith.constant 0 : index
    %c0_36 = arith.constant 0 : index
    %194 = vector.load %arg8[%c0_35, %c0_36] : memref<1x128xf32, #tpu.memory_space<vmem>>, vector<1x128xf32>
    %195 = vector.broadcast %194 : vector<1x128xf32> to vector<8x128xf32>
    %196 = arith.addf %193, %195 : vector<8x128xf32>
    %c0_37 = arith.constant 0 : index
    %c0_38 = arith.constant 0 : index
    %197 = vector.load %arg9[%c0_37, %c0_38] : memref<8x128xf32, #tpu.memory_space<vmem>>, vector<8x128xf32>
    tpu.vector_store %arg9[%c0_37, %c0_38], %196 {strides = array<i32>} : memref<8x128xf32, #tpu.memory_space<vmem>>, vector<8x128xf32>,
    return
  }
}

</mosaic_0001>

<llo_original>
// kernel: tpu_custom_call.1
$region0: #{tpu_custom_call.1}
  #allocation0 [shape = 'u32[]', space=smem, size = 0x4, offset = 0x4, fixed_abs, tag = 'smem constant byte address 0x4 - core index']
  #allocation1 [shape = 'u32[144,128]{1,0:T(1,128)}', space=vmem, size = 0x12000, scoped, tag = 'internal scratch']
  %s0 = inlined_call_operand.hbm [shape: f32[64,128], index: 0, kind: input, shape index: {}]
  %s1 = inlined_call_operand.hbm [shape: f32[128,384], index: 1, kind: input, shape index: {}]
  %s2 = inlined_call_operand.hbm [shape: f32[128,384], index: 2, kind: input, shape index: {}]
  %s3 = inlined_call_operand.vmem [shape: f32[1,384], index: 3, kind: input, shape index: {}]
  %s4 = inlined_call_operand.vmem [shape: f32[1,128], index: 4, kind: input, shape index: {}]
  %s5 = inlined_call_operand.hbm [shape: f32[128,128], index: 5, kind: input, shape index: {}]
  %s6 = inlined_call_operand.vmem [shape: f32[1,128], index: 6, kind: input, shape index: {}]
  %s7 = inlined_call_operand.hbm [shape: f32[128,128], index: 7, kind: input, shape index: {}]
  %s8 = inlined_call_operand.vmem [shape: f32[1,128], index: 8, kind: input, shape index: {}]
  %s9 = inlined_call_operand.hbm [shape: f32[8,128], index: 9, kind: output, shape index: {}]
  %s10 = sld [smem:[#allocation0]]
  $region66: #{tpu_custom_call.1} parent=0
    _
  %s12 = ssub.s32 1, %s10
  %s13 = scalar_select 0, %s12, %s10
  $region1: #{tpu_custom_call.1} parent=0
    #allocation2 [shape = 'u8[32768]{0}', space=vmem, size = 0x8000, scoped, tag = 'input window, operand 0, single buffered']
    #allocation3 [shape = 's32[1]{0}', space=sflag, size = 0x4, scoped, tag = 'scoped memory for tpu_custom_call.1']
    #allocation4 [shape = 's32[1]{0}', space=sflag, size = 0x4, scoped, tag = 'scoped memory for tpu_custom_call.1']
    #allocation5 [shape = 'u8[196608]{0}', space=vmem, size = 0x30000, scoped, tag = 'input window, operand 1, single buffered']
    #allocation6 [shape = 's32[1]{0}', space=sflag, size = 0x4, scoped, tag = 'scoped memory for tpu_custom_call.1']
    #allocation7 [shape = 'u8[196608]{0}', space=vmem, size = 0x30000, scoped, tag = 'input window, operand 2, single buffered']
    #allocation8 [shape = 'u8[65536]{0}', space=vmem, size = 0x10000, scoped, tag = 'input window, operand 5, single buffered']
    #allocation9 [shape = 's32[1]{0}', space=sflag, size = 0x4, scoped, tag = 'scoped memory for tpu_custom_call.1']
    #allocation10 [shape = 'u8[65536]{0}', space=vmem, size = 0x10000, scoped, tag = 'input window, operand 7, single buffered']
    #allocation11 [shape = 'u8[4096]{0}', space=vmem, size = 0x1000, scoped, tag = 'output window, operand 0, single buffered']
    %14 = vsyncpa [#allocation3], 0
    %15 = vsyncpa [#allocation6], 0
    %16 = vsyncpa [#allocation9], 0
    %17 = vsyncpa [#allocation4], 0
    // Predicated region
    $region2: #{tpu_custom_call.1} parent=1 // pred_check
      _
    $region3: #{tpu_custom_call.1} parent=1 // pred_check_branch
      %19 = sbr.rel (0) target = $region5
    $region4: #{tpu_custom_call.1} parent=1 // pred_region
      %s21 = ssub.s32 1024, 1024
      %22 = vsyncadd [#allocation3], %s21
      %s23 = sshll.u32 [#allocation2], 4
      %s24 = int_to_ptr.vmem [resolvable:$true] %s23
      %29 = dma.hbm_to_vmem [thread:$0]  %s0, 1024, %s24, [#allocation3], 128, 128, 8
    $region5: #{tpu_custom_call.1} parent=1 // pred_fallthru
      _
    // Predicated region
    $region6: #{tpu_custom_call.1} parent=1 // pred_check
      _
    $region7: #{tpu_custom_call.1} parent=1 // pred_check_branch
      %31 = sbr.rel (0) target = $region9
    $region8: #{tpu_custom_call.1} parent=1 // pred_region
      %s33 = ssub.s32 6144, 6144
      %34 = vsyncadd [#allocation6], %s33
      %s35 = sshll.u32 [#allocation5], 4
      %s36 = int_to_ptr.vmem [resolvable:$true] %s35
      %41 = dma.hbm_to_vmem [thread:$0]  %s1, 6144, %s36, [#allocation6], 384, 384, 24
    $region9: #{tpu_custom_call.1} parent=1 // pred_fallthru
      _
    // Predicated region
    $region10: #{tpu_custom_call.1} parent=1 // pred_check
      _
    $region11: #{tpu_custom_call.1} parent=1 // pred_check_branch
      %43 = sbr.rel (0) target = $region13
    $region12: #{tpu_custom_call.1} parent=1 // pred_region
      %s45 = ssub.s32 6144, 6144
      %46 = vsyncadd [#allocation6], %s45
      %s47 = sshll.u32 [#allocation7], 4
      %s48 = int_to_ptr.vmem [resolvable:$true] %s47
      %53 = dma.hbm_to_vmem [thread:$0]  %s2, 6144, %s48, [#allocation6], 384, 384, 24
    $region13: #{tpu_custom_call.1} parent=1 // pred_fallthru
      _
    // Predicated region
    $region14: #{tpu_custom_call.1} parent=1 // pred_check
      _
    $region15: #{tpu_custom_call.1} parent=1 // pred_check_branch
      %55 = sbr.rel (0) target = $region17
    $region16: #{tpu_custom_call.1} parent=1 // pred_region
      _
    $region17: #{tpu_custom_call.1} parent=1 // pred_fallthru
      _
    // Predicated region
    $region18: #{tpu_custom_call.1} parent=1 // pred_check
      _
    $region19: #{tpu_custom_call.1} parent=1 // pred_check_branch
      %57 = sbr.rel (0) target = $region21
    $region20: #{tpu_custom_call.1} parent=1 // pred_region
      _
    $region21: #{tpu_custom_call.1} parent=1 // pred_fallthru
      _
    // Predicated region
    $region22: #{tpu_custom_call.1} parent=1 // pred_check
      _
    $region23: #{tpu_custom_call.1} parent=1 // pred_check_branch
      %59 = sbr.rel (0) target = $region25
    $region24: #{tpu_custom_call.1} parent=1 // pred_region
      %s61 = ssub.s32 2048, 2048
      %62 = vsyncadd [#allocation9], %s61
      %s63 = sshll.u32 [#allocation8], 4
      %s64 = int_to_ptr.vmem [resolvable:$true] %s63
      %69 = dma.hbm_to_vmem [thread:$0]  %s5, 2048, %s64, [#allocation9], 128, 128, 8
    $region25: #{tpu_custom_call.1} parent=1 // pred_fallthru
      _
    // Predicated region
    $region26: #{tpu_custom_call.1} parent=1 // pred_check
      _
    $region27: #{tpu_custom_call.1} parent=1 // pred_check_branch
      %71 = sbr.rel (0) target = $region29
    $region28: #{tpu_custom_call.1} parent=1 // pred_region
      _
    $region29: #{tpu_custom_call.1} parent=1 // pred_fallthru
      _
    // Predicated region
    $region30: #{tpu_custom_call.1} parent=1 // pred_check
      _
    $region31: #{tpu_custom_call.1} parent=1 // pred_check_branch
      %73 = sbr.rel (0) target = $region33
    $region32: #{tpu_custom_call.1} parent=1 // pred_region
      %s75 = ssub.s32 2048, 2048
      %76 = vsyncadd [#allocation9], %s75
      %s77 = sshll.u32 [#allocation10], 4
      %s78 = int_to_ptr.vmem [resolvable:$true] %s77
      %83 = dma.hbm_to_vmem [thread:$0]  %s7, 2048, %s78, [#allocation9], 128, 128, 8
    $region33: #{tpu_custom_call.1} parent=1 // pred_fallthru
      _
    // Predicated region
    $region34: #{tpu_custom_call.1} parent=1 // pred_check
      _
    $region35: #{tpu_custom_call.1} parent=1 // pred_check_branch
      %85 = sbr.rel (0) target = $region37
    $region36: #{tpu_custom_call.1} parent=1 // pred_region
      _
    $region37: #{tpu_custom_call.1} parent=1 // pred_fallthru
      _
    // Predicated region
    $region38: #{tpu_custom_call.1} parent=1 // pred_check
      _
    $region39: #{tpu_custom_call.1} parent=1 // pred_check_branch
      %87 = sbr.rel (0) target = $region41
    $region40: #{tpu_custom_call.1} parent=1 // pred_region
      %88 = dma.done [#allocation3], 1024
    $region41: #{tpu_custom_call.1} parent=1 // pred_fallthru
      _
    // Predicated region
    $region42: #{tpu_custom_call.1} parent=1 // pred_check
      _
    $region43: #{tpu_custom_call.1} parent=1 // pred_check_branch
      %90 = sbr.rel (0) target = $region45
    $region44: #{tpu_custom_call.1} parent=1 // pred_region
      %91 = dma.done [#allocation6], 6144
    $region45: #{tpu_custom_call.1} parent=1 // pred_fallthru
      _
    // Predicated region
    $region46: #{tpu_custom_call.1} parent=1 // pred_check
      _
    $region47: #{tpu_custom_call.1} parent=1 // pred_check_branch
      %93 = sbr.rel (0) target = $region49
    $region48: #{tpu_custom_call.1} parent=1 // pred_region
      %94 = dma.done [#allocation6], 6144
    $region49: #{tpu_custom_call.1} parent=1 // pred_fallthru
      _
    // Predicated region
    $region50: #{tpu_custom_call.1} parent=1 // pred_check
      _
    $region51: #{tpu_custom_call.1} parent=1 // pred_check_branch
      %96 = sbr.rel (0) target = $region53
    $region52: #{tpu_custom_call.1} parent=1 // pred_region
      %97 = dma.done [#allocation9], 2048
    $region53: #{tpu_custom_call.1} parent=1 // pred_fallthru
      _
    // Predicated region
    $region54: #{tpu_custom_call.1} parent=1 // pred_check
      _
    $region55: #{tpu_custom_call.1} parent=1 // pred_check_branch
      %99 = sbr.rel (0) target = $region57
    $region56: #{tpu_custom_call.1} parent=1 // pred_region
      %100 = dma.done [#allocation9], 2048
    $region57: #{tpu_custom_call.1} parent=1 // pred_fallthru
      _
    %v101 = vld [vmem:[#allocation2] sm:$0xff]
    %v102 = vld [vmem:[#allocation2 + $0x8] sm:$0xff]
    %v103 = vld [vmem:[#allocation2 + $0x10] sm:$0xff]
    %v104 = vld [vmem:[#allocation2 + $0x18] sm:$0xff]
    %v105 = vld [vmem:[#allocation2 + $0x20] sm:$0xff]
    %v106 = vld [vmem:[#allocation2 + $0x28] sm:$0xff]
    %v107 = vld [vmem:[#allocation2 + $0x30] sm:$0xff]
    %v108 = vld [vmem:[#allocation2 + $0x38] sm:$0xff]
    %v109 = vld [vmem:[#allocation5] sm:$0xff]
    %v110 = vld [vmem:[#allocation5 + $0x8] sm:$0xff]
    %v111 = vld [vmem:[#allocation5 + $0x10] sm:$0xff]
    %v112 = vld [vmem:[#allocation5 + $0x18] sm:$0xff]
    %v113 = vld [vmem:[#allocation5 + $0x20] sm:$0xff]
    %v114 = vld [vmem:[#allocation5 + $0x28] sm:$0xff]
    %v115 = vld [vmem:[#allocation5 + $0x30] sm:$0xff]
    %v116 = vld [vmem:[#allocation5 + $0x38] sm:$0xff]
    %v117 = vld [vmem:[#allocation5 + $0x40] sm:$0xff]
    %v118 = vld [vmem:[#allocation5 + $0x48] sm:$0xff]
    %v119 = vld [vmem:[#allocation5 + $0x50] sm:$0xff]
    %v120 = vld [vmem:[#allocation5 + $0x58] sm:$0xff]
    %v121 = vld [vmem:[#allocation5 + $0x60] sm:$0xff]
    %v122 = vld [vmem:[#allocation5 + $0x68] sm:$0xff]
    %v123 = vld [vmem:[#allocation5 + $0x70] sm:$0xff]
    %v124 = vld [vmem:[#allocation5 + $0x78] sm:$0xff]
    %v125 = vld [vmem:[#allocation5 + $0x80] sm:$0xff]
    %v126 = vld [vmem:[#allocation5 + $0x88] sm:$0xff]
    %v127 = vld [vmem:[#allocation5 + $0x90] sm:$0xff]
    %v128 = vld [vmem:[#allocation5 + $0x98] sm:$0xff]
    %v129 = vld [vmem:[#allocation5 + $0xa0] sm:$0xff]
    %v130 = vld [vmem:[#allocation5 + $0xa8] sm:$0xff]
    %v131 = vld [vmem:[#allocation5 + $0xb0] sm:$0xff]
    %v132 = vld [vmem:[#allocation5 + $0xb8] sm:$0xff]
    %v133 = vld [vmem:[#allocation5 + $0xc0] sm:$0xff]
    %v134 = vld [vmem:[#allocation5 + $0xc8] sm:$0xff]
    %v135 = vld [vmem:[#allocation5 + $0xd0] sm:$0xff]
    %v136 = vld [vmem:[#allocation5 + $0xd8] sm:$0xff]
    %v137 = vld [vmem:[#allocation5 + $0xe0] sm:$0xff]
    %v138 = vld [vmem:[#allocation5 + $0xe8] sm:$0xff]
    %v139 = vld [vmem:[#allocation5 + $0xf0] sm:$0xff]
    %v140 = vld [vmem:[#allocation5 + $0xf8] sm:$0xff]
    %v141 = vld [vmem:[#allocation5 + $0x100] sm:$0xff]
    %v142 = vld [vmem:[#allocation5 + $0x108] sm:$0xff]
    %v143 = vld [vmem:[#allocation5 + $0x110] sm:$0xff]
    %v144 = vld [vmem:[#allocation5 + $0x118] sm:$0xff]
    %v145 = vld [vmem:[#allocation5 + $0x120] sm:$0xff]
    %v146 = vld [vmem:[#allocation5 + $0x128] sm:$0xff]
    %v147 = vld [vmem:[#allocation5 + $0x130] sm:$0xff]
    %v148 = vld [vmem:[#allocation5 + $0x138] sm:$0xff]
    %v149 = vld [vmem:[#allocation5 + $0x140] sm:$0xff]
    %v150 = vld [vmem:[#allocation5 + $0x148] sm:$0xff]
    %v151 = vld [vmem:[#allocation5 + $0x150] sm:$0xff]
    %v152 = vld [vmem:[#allocation5 + $0x158] sm:$0xff]
    %v153 = vld [vmem:[#allocation5 + $0x160] sm:$0xff]
    %v154 = vld [vmem:[#allocation5 + $0x168] sm:$0xff]
    %v155 = vld [vmem:[#allocation5 + $0x170] sm:$0xff]
    %v156 = vld [vmem:[#allocation5 + $0x178] sm:$0xff]
    %v157 = vld [vmem:[%s3] sm:$0x7]
    %v159 = vlaneseq
    %v160 = vshrl.u32 %v159, 7
    %v161 = vsub.s32 0, %v160
    %v162 = vrot.slane %v157, %v161
    %v163 = vlaneseq
    %v164 = vshrl.u32 %v163, 7
    %v165 = vsub.s32 1, %v164
    %v166 = vrot.slane %v157, %v165
    %v167 = vlaneseq
    %v168 = vshrl.u32 %v167, 7
    %v169 = vsub.s32 2, %v168
    %v170 = vrot.slane %v157, %v169
    %174 = vmatprep.subr.mxu0 %v110
    %175 = vmatpush1.msra.mxu0 %v109
    %176 = vmatprep.subr.mxu0 %v113
    %177 = vmatpush1.msra.mxu0 %v112
    %178 = vmatprep.subr.mxu0 %v116
    %179 = vmatpush1.msra.mxu0 %v115
    %180 = vmatprep.subr.mxu0 %v119
    %181 = vmatpush1.msra.mxu0 %v118
    %182 = vmatprep.subr.mxu0 %v122
    %183 = vmatpush1.msra.mxu0 %v121
    %184 = vmatprep.subr.mxu0 %v125
    %185 = vmatpush1.msra.mxu0 %v124
    %186 = vmatprep.subr.mxu0 %v128
    %187 = vmatpush1.msra.mxu0 %v127
    %188 = vmatprep.subr.mxu0 %v131
    %189 = vmatpush1.msra.mxu0 %v130
    %190 = vmatprep.subr.mxu0 %v134
    %191 = vmatpush1.msra.mxu0 %v133
    %192 = vmatprep.subr.mxu0 %v137
    %193 = vmatpush1.msra.mxu0 %v136
    %194 = vmatprep.subr.mxu0 %v140
    %195 = vmatpush1.msra.mxu0 %v139
    %196 = vmatprep.subr.mxu0 %v143
    %197 = vmatpush1.msra.mxu0 %v142
    %198 = vmatprep.subr.mxu0 %v146
    %199 = vmatpush1.msra.mxu0 %v145
    %200 = vmatprep.subr.mxu0 %v149
    %201 = vmatpush1.msra.mxu0 %v148
    %202 = vmatprep.subr.mxu0 %v152
    %203 = vmatpush1.msra.mxu0 %v151
    %204 = vmatprep.subr.mxu0 %v155
    %205 = vmatpush1.msra.mxu0 %v154
    %206 = vmatprep.subr.mxu0 0.0
    %207 = vmatpush1.msra.mxu0 0.0
    %208 = vmatprep.subr.mxu0 0.0
    %209 = vmatpush1.msra.mxu0 0.0
    %210 = vmatprep.subr.mxu0 0.0
    %211 = vmatpush1.msra.mxu0 0.0
    %212 = vmatprep.subr.mxu0 0.0
    %213 = vmatpush1.msra.mxu0 0.0
    %214 = vmatprep.subr.mxu0 0.0
    %215 = vmatpush1.msra.mxu0 0.0
    %216 = vmatprep.subr.mxu0 0.0
    %217 = vmatpush1.msra.mxu0 0.0
    %218 = vmatprep.subr.mxu0 0.0
    %219 = vmatpush1.msra.mxu0 0.0
    %220 = vmatprep.subr.mxu0 0.0
    %221 = vmatpush1.msra.mxu0 0.0
    %222 = vmatprep.subr.mxu0 0.0
    %223 = vmatpush1.msra.mxu0 0.0
    %224 = vmatprep.subr.mxu0 0.0
    %225 = vmatpush1.msra.mxu0 0.0
    %226 = vmatprep.subr.mxu0 0.0
    %227 = vmatpush1.msra.mxu0 0.0
    %228 = vmatprep.subr.mxu0 0.0
    %229 = vmatpush1.msra.mxu0 0.0
    %230 = vmatprep.subr.mxu0 0.0
    %231 = vmatpush1.msra.mxu0 0.0
    %232 = vmatprep.subr.mxu0 0.0
    %233 = vmatpush1.msra.mxu0 0.0
    %234 = vmatprep.subr.mxu0 0.0
    %235 = vmatpush1.msra.mxu0 0.0
    %236 = vmatprep.subr.mxu0 0.0
    %237 = vmatpush1.msra.mxu0 0.0
    %238 = vmatprep.mubr.f32.mxu0 0.0
    %239 = vmatmul.mubr.f32.gmra.mrb[0].mxu0 %v101
    %v240 = vpop.f32.mrb[0].mxu0
    %v241 = vadd.f32 %v162, %v240
    %v242 = vpop.f32.mrb[0].mxu0
    %v243 = vadd.f32 %v166, %v242
    %244 = vmatprep.mubr.f32.mxu0 0.0
    %245 = vmatmul.mubr.f32.gmra.mrb[0].mxu0 %v102
    %v246 = vpop.f32.mrb[0].mxu0
    %v247 = vadd.f32 %v162, %v246
    %v248 = vpop.f32.mrb[0].mxu0
    %v249 = vadd.f32 %v166, %v248
    %250 = vmatprep.mubr.f32.mxu0 0.0
    %251 = vmatmul.mubr.f32.gmra.mrb[0].mxu0 %v103
    %v252 = vpop.f32.mrb[0].mxu0
    %v253 = vadd.f32 %v162, %v252
    %v254 = vpop.f32.mrb[0].mxu0
    %v255 = vadd.f32 %v166, %v254
    %256 = vmatprep.mubr.f32.mxu0 0.0
    %257 = vmatmul.mubr.f32.gmra.mrb[0].mxu0 %v104
    %v258 = vpop.f32.mrb[0].mxu0
    %v259 = vadd.f32 %v162, %v258
    %v260 = vpop.f32.mrb[0].mxu0
    %v261 = vadd.f32 %v166, %v260
    %262 = vmatprep.mubr.f32.mxu0 0.0
    %263 = vmatmul.mubr.f32.gmra.mrb[0].mxu0 %v105
    %v264 = vpop.f32.mrb[0].mxu0
    %v265 = vadd.f32 %v162, %v264
    %v266 = vpop.f32.mrb[0].mxu0
    %v267 = vadd.f32 %v166, %v266
    %268 = vmatprep.mubr.f32.mxu0 0.0
    %269 = vmatmul.mubr.f32.gmra.mrb[0].mxu0 %v106
    %v270 = vpop.f32.mrb[0].mxu0
    %v271 = vadd.f32 %v162, %v270
    %v272 = vpop.f32.mrb[0].mxu0
    %v273 = vadd.f32 %v166, %v272
    %274 = vmatprep.mubr.f32.mxu0 0.0
    %275 = vmatmul.mubr.f32.gmra.mrb[0].mxu0 %v107
    %v276 = vpop.f32.mrb[0].mxu0
    %v277 = vadd.f32 %v162, %v276
    %v278 = vpop.f32.mrb[0].mxu0
    %v279 = vadd.f32 %v166, %v278
    %280 = vmatprep.mubr.f32.mxu0 0.0
    %281 = vmatmul.mubr.f32.gmra.mrb[0].mxu0 %v108
    %v282 = vpop.f32.mrb[0].mxu0
    %v283 = vadd.f32 %v162, %v282
    %v284 = vpop.f32.mrb[0].mxu0
    %v285 = vadd.f32 %v166, %v284
    %286 = vdwg.mxu0
    %287 = vmatprep.subr.mxu0 0.0
    %288 = vmatpush1.msra.mxu0 %v111
    %289 = vmatprep.subr.mxu0 0.0
    %290 = vmatpush1.msra.mxu0 %v114
    %291 = vmatprep.subr.mxu0 0.0
    %292 = vmatpush1.msra.mxu0 %v117
    %293 = vmatprep.subr.mxu0 0.0
    %294 = vmatpush1.msra.mxu0 %v120
    %295 = vmatprep.subr.mxu0 0.0
    %296 = vmatpush1.msra.mxu0 %v123
    %297 = vmatprep.subr.mxu0 0.0
    %298 = vmatpush1.msra.mxu0 %v126
    %299 = vmatprep.subr.mxu0 0.0
    %300 = vmatpush1.msra.mxu0 %v129
    %301 = vmatprep.subr.mxu0 0.0
    %302 = vmatpush1.msra.mxu0 %v132
    %303 = vmatprep.subr.mxu0 0.0
    %304 = vmatpush1.msra.mxu0 %v135
    %305 = vmatprep.subr.mxu0 0.0
    %306 = vmatpush1.msra.mxu0 %v138
    %307 = vmatprep.subr.mxu0 0.0
    %308 = vmatpush1.msra.mxu0 %v141
    %309 = vmatprep.subr.mxu0 0.0
    %310 = vmatpush1.msra.mxu0 %v144
    %311 = vmatprep.subr.mxu0 0.0
    %312 = vmatpush1.msra.mxu0 %v147
    %313 = vmatprep.subr.mxu0 0.0
    %314 = vmatpush1.msra.mxu0 %v150
    %315 = vmatprep.subr.mxu0 0.0
    %316 = vmatpush1.msra.mxu0 %v153
    %317 = vmatprep.subr.mxu0 0.0
    %318 = vmatpush1.msra.mxu0 %v156
    %319 = vmatprep.subr.mxu0 0.0
    %320 = vmatpush1.msra.mxu0 0.0
    %321 = vmatprep.subr.mxu0 0.0
    %322 = vmatpush1.msra.mxu0 0.0
    %323 = vmatprep.subr.mxu0 0.0
    %324 = vmatpush1.msra.mxu0 0.0
    %325 = vmatprep.subr.mxu0 0.0
    %326 = vmatpush1.msra.mxu0 0.0
    %327 = vmatprep.subr.mxu0 0.0
    %328 = vmatpush1.msra.mxu0 0.0
    %329 = vmatprep.subr.mxu0 0.0
    %330 = vmatpush1.msra.mxu0 0.0
    %331 = vmatprep.subr.mxu0 0.0
    %332 = vmatpush1.msra.mxu0 0.0
    %333 = vmatprep.subr.mxu0 0.0
    %334 = vmatpush1.msra.mxu0 0.0
    %335 = vmatprep.subr.mxu0 0.0
    %336 = vmatpush1.msra.mxu0 0.0
    %337 = vmatprep.subr.mxu0 0.0
    %338 = vmatpush1.msra.mxu0 0.0
    %339 = vmatprep.subr.mxu0 0.0
    %340 = vmatpush1.msra.mxu0 0.0
    %341 = vmatprep.subr.mxu0 0.0
    %342 = vmatpush1.msra.mxu0 0.0
    %343 = vmatprep.subr.mxu0 0.0
    %344 = vmatpush1.msra.mxu0 0.0
    %345 = vmatprep.subr.mxu0 0.0
    %346 = vmatpush1.msra.mxu0 0.0
    %347 = vmatprep.subr.mxu0 0.0
    %348 = vmatpush1.msra.mxu0 0.0
    %349 = vmatprep.subr.mxu0 0.0
    %350 = vmatpush1.msra.mxu0 0.0
    %351 = vmatprep.mubr.f32.mxu0 0.0
    %352 = vmatmul.mubr.f32.gmra.mrb[0].mxu0 %v101
    %v353 = vpop.f32.mrb[0].mxu0
    %v354 = vadd.f32 %v170, %v353
    %v355 = vpop.f32.mrb[0].mxu0
    %356 = vmatprep.mubr.f32.mxu0 0.0
    %357 = vmatmul.mubr.f32.gmra.mrb[0].mxu0 %v102
    %v358 = vpop.f32.mrb[0].mxu0
    %v359 = vadd.f32 %v170, %v358
    %v360 = vpop.f32.mrb[0].mxu0
    %361 = vmatprep.mubr.f32.mxu0 0.0
    %362 = vmatmul.mubr.f32.gmra.mrb[0].mxu0 %v103
    %v363 = vpop.f32.mrb[0].mxu0
    %v364 = vadd.f32 %v170, %v363
    %v365 = vpop.f32.mrb[0].mxu0
    %366 = vmatprep.mubr.f32.mxu0 0.0
    %367 = vmatmul.mubr.f32.gmra.mrb[0].mxu0 %v104
    %v368 = vpop.f32.mrb[0].mxu0
    %v369 = vadd.f32 %v170, %v368
    %v370 = vpop.f32.mrb[0].mxu0
    %371 = vmatprep.mubr.f32.mxu0 0.0
    %372 = vmatmul.mubr.f32.gmra.mrb[0].mxu0 %v105
    %v373 = vpop.f32.mrb[0].mxu0
    %v374 = vadd.f32 %v170, %v373
    %v375 = vpop.f32.mrb[0].mxu0
    %376 = vmatprep.mubr.f32.mxu0 0.0
    %377 = vmatmul.mubr.f32.gmra.mrb[0].mxu0 %v106
    %v378 = vpop.f32.mrb[0].mxu0
    %v379 = vadd.f32 %v170, %v378
    %v380 = vpop.f32.mrb[0].mxu0
    %381 = vmatprep.mubr.f32.mxu0 0.0
    %382 = vmatmul.mubr.f32.gmra.mrb[0].mxu0 %v107
    %v383 = vpop.f32.mrb[0].mxu0
    %v384 = vadd.f32 %v170, %v383
    %v385 = vpop.f32.mrb[0].mxu0
    %386 = vmatprep.mubr.f32.mxu0 0.0
    %387 = vmatmul.mubr.f32.gmra.mrb[0].mxu0 %v108
    %v388 = vpop.f32.mrb[0].mxu0
    %v389 = vadd.f32 %v170, %v388
    %v390 = vpop.f32.mrb[0].mxu0
    %391 = vdwg.mxu0
    %v392 = vld [vmem:[#allocation7] sm:$0xff]
    %v393 = vld [vmem:[#allocation7 + $0x8] sm:$0xff]
    %v394 = vld [vmem:[#allocation7 + $0x10] sm:$0xff]
    %v395 = vld [vmem:[#allocation7 + $0x18] sm:$0xff]
    %v396 = vld [vmem:[#allocation7 + $0x20] sm:$0xff]
    %v397 = vld [vmem:[#allocation7 + $0x28] sm:$0xff]
    %v398 = vld [vmem:[#allocation7 + $0x30] sm:$0xff]
    %v399 = vld [vmem:[#allocation7 + $0x38] sm:$0xff]
    %v400 = vld [vmem:[#allocation7 + $0x40] sm:$0xff]
    %v401 = vld [vmem:[#allocation7 + $0x48] sm:$0xff]
    %v402 = vld [vmem:[#allocation7 + $0x50] sm:$0xff]
    %v403 = vld [vmem:[#allocation7 + $0x58] sm:$0xff]
    %v404 = vld [vmem:[#allocation7 + $0x60] sm:$0xff]
    %v405 = vld [vmem:[#allocation7 + $0x68] sm:$0xff]
    %v406 = vld [vmem:[#allocation7 + $0x70] sm:$0xff]
    %v407 = vld [vmem:[#allocation7 + $0x78] sm:$0xff]
    %v408 = vld [vmem:[#allocation7 + $0x80] sm:$0xff]
    %v409 = vld [vmem:[#allocation7 + $0x88] sm:$0xff]
    %v410 = vld [vmem:[#allocation7 + $0x90] sm:$0xff]
    %v411 = vld [vmem:[#allocation7 + $0x98] sm:$0xff]
    %v412 = vld [vmem:[#allocation7 + $0xa0] sm:$0xff]
    %v413 = vld [vmem:[#allocation7 + $0xa8] sm:$0xff]
    %v414 = vld [vmem:[#allocation7 + $0xb0] sm:$0xff]
    %v415 = vld [vmem:[#allocation7 + $0xb8] sm:$0xff]
    %v416 = vld [vmem:[#allocation7 + $0xc0] sm:$0xff]
    %v417 = vld [vmem:[#allocation7 + $0xc8] sm:$0xff]
    %v418 = vld [vmem:[#allocation7 + $0xd0] sm:$0xff]
    %v419 = vld [vmem:[#allocation7 + $0xd8] sm:$0xff]
    %v420 = vld [vmem:[#allocation7 + $0xe0] sm:$0xff]
    %v421 = vld [vmem:[#allocation7 + $0xe8] sm:$0xff]
    %v422 = vld [vmem:[#allocation7 + $0xf0] sm:$0xff]
    %v423 = vld [vmem:[#allocation7 + $0xf8] sm:$0xff]
    %v424 = vld [vmem:[#allocation7 + $0x100] sm:$0xff]
    %v425 = vld [vmem:[#allocation7 + $0x108] sm:$0xff]
    %v426 = vld [vmem:[#allocation7 + $0x110] sm:$0xff]
    %v427 = vld [vmem:[#allocation7 + $0x118] sm:$0xff]
    %v428 = vld [vmem:[#allocation7 + $0x120] sm:$0xff]
    %v429 = vld [vmem:[#allocation7 + $0x128] sm:$0xff]
    %v430 = vld [vmem:[#allocation7 + $0x130] sm:$0xff]
    %v431 = vld [vmem:[#allocation7 + $0x138] sm:$0xff]
    %v432 = vld [vmem:[#allocation7 + $0x140] sm:$0xff]
    %v433 = vld [vmem:[#allocation7 + $0x148] sm:$0xff]
    %v434 = vld [vmem:[#allocation7 + $0x150] sm:$0xff]
    %v435 = vld [vmem:[#allocation7 + $0x158] sm:$0xff]
    %v436 = vld [vmem:[#allocation7 + $0x160] sm:$0xff]
    %v437 = vld [vmem:[#allocation7 + $0x168] sm:$0xff]
    %v438 = vld [vmem:[#allocation7 + $0x170] sm:$0xff]
    %v439 = vld [vmem:[#allocation7 + $0x178] sm:$0xff]
    %v440 = vld [vmem:[%s4] sm:$0x1]
    %441 = vmatprep.subr.mxu0 %v393
    %442 = vmatpush1.msra.mxu0 %v392
    %443 = vmatprep.subr.mxu0 %v396
    %444 = vmatpush1.msra.mxu0 %v395
    %445 = vmatprep.subr.mxu0 %v399
    %446 = vmatpush1.msra.mxu0 %v398
    %447 = vmatprep.subr.mxu0 %v402
    %448 = vmatpush1.msra.mxu0 %v401
    %449 = vmatprep.subr.mxu0 %v405
    %450 = vmatpush1.msra.mxu0 %v404
    %451 = vmatprep.subr.mxu0 %v408
    %452 = vmatpush1.msra.mxu0 %v407
    %453 = vmatprep.subr.mxu0 %v411
    %454 = vmatpush1.msra.mxu0 %v410
    %455 = vmatprep.subr.mxu0 %v414
    %456 = vmatpush1.msra.mxu0 %v413
    %457 = vmatprep.subr.mxu0 %v417
    %458 = vmatpush1.msra.mxu0 %v416
    %459 = vmatprep.subr.mxu0 %v420
    %460 = vmatpush1.msra.mxu0 %v419
    %461 = vmatprep.subr.mxu0 %v423
    %462 = vmatpush1.msra.mxu0 %v422
    %463 = vmatprep.subr.mxu0 %v426
    %464 = vmatpush1.msra.mxu0 %v425
    %465 = vmatprep.subr.mxu0 %v429
    %466 = vmatpush1.msra.mxu0 %v428
    %467 = vmatprep.subr.mxu0 %v432
    %468 = vmatpush1.msra.mxu0 %v431
    %469 = vmatprep.subr.mxu0 %v435
    %470 = vmatpush1.msra.mxu0 %v434
    %471 = vmatprep.subr.mxu0 %v438
    %472 = vmatpush1.msra.mxu0 %v437
    %473 = vmatprep.subr.mxu0 0.0
    %474 = vmatpush1.msra.mxu0 0.0
    %475 = vmatprep.subr.mxu0 0.0
    %476 = vmatpush1.msra.mxu0 0.0
    %477 = vmatprep.subr.mxu0 0.0
    %478 = vmatpush1.msra.mxu0 0.0
    %479 = vmatprep.subr.mxu0 0.0
    %480 = vmatpush1.msra.mxu0 0.0
    %481 = vmatprep.subr.mxu0 0.0
    %482 = vmatpush1.msra.mxu0 0.0
    %483 = vmatprep.subr.mxu0 0.0
    %484 = vmatpush1.msra.mxu0 0.0
    %485 = vmatprep.subr.mxu0 0.0
    %486 = vmatpush1.msra.mxu0 0.0
    %487 = vmatprep.subr.mxu0 0.0
    %488 = vmatpush1.msra.mxu0 0.0
    %489 = vmatprep.subr.mxu0 0.0
    %490 = vmatpush1.msra.mxu0 0.0
    %491 = vmatprep.subr.mxu0 0.0
    %492 = vmatpush1.msra.mxu0 0.0
    %493 = vmatprep.subr.mxu0 0.0
    %494 = vmatpush1.msra.mxu0 0.0
    %495 = vmatprep.subr.mxu0 0.0
    %496 = vmatpush1.msra.mxu0 0.0
    %497 = vmatprep.subr.mxu0 0.0
    %498 = vmatpush1.msra.mxu0 0.0
    %499 = vmatprep.subr.mxu0 0.0
    %500 = vmatpush1.msra.mxu0 0.0
    %501 = vmatprep.subr.mxu0 0.0
    %502 = vmatpush1.msra.mxu0 0.0
    %503 = vmatprep.subr.mxu0 0.0
    %504 = vmatpush1.msra.mxu0 0.0
    %505 = vmatprep.mubr.f32.mxu0 0.0
    %506 = vmatmul.mubr.f32.gmra.mrb[0].mxu0 0.0
    %v507 = vpop.f32.mrb[0].mxu0
    %v508 = vadd.f32 0.0, %v507
    %v509 = vpop.f32.mrb[0].mxu0
    %v510 = vadd.f32 0.0, %v509
    %511 = vdwg.mxu0
    %512 = vmatprep.subr.mxu0 0.0
    %513 = vmatpush1.msra.mxu0 %v394
    %514 = vmatprep.subr.mxu0 0.0
    %515 = vmatpush1.msra.mxu0 %v397
    %516 = vmatprep.subr.mxu0 0.0
    %517 = vmatpush1.msra.mxu0 %v400
    %518 = vmatprep.subr.mxu0 0.0
    %519 = vmatpush1.msra.mxu0 %v403
    %520 = vmatprep.subr.mxu0 0.0
    %521 = vmatpush1.msra.mxu0 %v406
    %522 = vmatprep.subr.mxu0 0.0
    %523 = vmatpush1.msra.mxu0 %v409
    %524 = vmatprep.subr.mxu0 0.0
    %525 = vmatpush1.msra.mxu0 %v412
    %526 = vmatprep.subr.mxu0 0.0
    %527 = vmatpush1.msra.mxu0 %v415
    %528 = vmatprep.subr.mxu0 0.0
    %529 = vmatpush1.msra.mxu0 %v418
    %530 = vmatprep.subr.mxu0 0.0
    %531 = vmatpush1.msra.mxu0 %v421
    %532 = vmatprep.subr.mxu0 0.0
    %533 = vmatpush1.msra.mxu0 %v424
    %534 = vmatprep.subr.mxu0 0.0
    %535 = vmatpush1.msra.mxu0 %v427
    %536 = vmatprep.subr.mxu0 0.0
    %537 = vmatpush1.msra.mxu0 %v430
    %538 = vmatprep.subr.mxu0 0.0
    %539 = vmatpush1.msra.mxu0 %v433
    %540 = vmatprep.subr.mxu0 0.0
    %541 = vmatpush1.msra.mxu0 %v436
    %542 = vmatprep.subr.mxu0 0.0
    %543 = vmatpush1.msra.mxu0 %v439
    %544 = vmatprep.subr.mxu0 0.0
    %545 = vmatpush1.msra.mxu0 0.0
    %546 = vmatprep.subr.mxu0 0.0
    %547 = vmatpush1.msra.mxu0 0.0
    %548 = vmatprep.subr.mxu0 0.0
    %549 = vmatpush1.msra.mxu0 0.0
    %550 = vmatprep.subr.mxu0 0.0
    %551 = vmatpush1.msra.mxu0 0.0
    %552 = vmatprep.subr.mxu0 0.0
    %553 = vmatpush1.msra.mxu0 0.0
    %554 = vmatprep.subr.mxu0 0.0
    %555 = vmatpush1.msra.mxu0 0.0
    %556 = vmatprep.subr.mxu0 0.0
    %557 = vmatpush1.msra.mxu0 0.0
    %558 = vmatprep.subr.mxu0 0.0
    %559 = vmatpush1.msra.mxu0 0.0
    %560 = vmatprep.subr.mxu0 0.0
    %561 = vmatpush1.msra.mxu0 0.0
    %562 = vmatprep.subr.mxu0 0.0
    %563 = vmatpush1.msra.mxu0 0.0
    %564 = vmatprep.subr.mxu0 0.0
    %565 = vmatpush1.msra.mxu0 0.0
    %566 = vmatprep.subr.mxu0 0.0
    %567 = vmatpush1.msra.mxu0 0.0
    %568 = vmatprep.subr.mxu0 0.0
    %569 = vmatpush1.msra.mxu0 0.0
    %570 = vmatprep.subr.mxu0 0.0
    %571 = vmatpush1.msra.mxu0 0.0
    %572 = vmatprep.subr.mxu0 0.0
    %573 = vmatpush1.msra.mxu0 0.0
    %574 = vmatprep.subr.mxu0 0.0
    %575 = vmatpush1.msra.mxu0 0.0
    %576 = vmatprep.mubr.f32.mxu0 0.0
    %577 = vmatmul.mubr.f32.gmra.mrb[0].mxu0 0.0
    %v578 = vpop.f32.mrb[0].mxu0
    %v579 = vadd.f32 0.0, %v578
    %v580 = vpop.f32.mrb[0].mxu0
    %581 = vdwg.mxu0
    %v582 = vadd.f32 %v241, %v508
    %v583 = vadd.f32 %v243, %v510
    %v584 = vxor.u32 %v582, 2147483648
    %v585 = vxor.u32 %v583, 2147483648
    %v586 = vmul.f32 %v584, 1.442695
    %v587 = vpow.pop %v586
    %v588 = vmul.f32 %v585, 1.442695
    %v589 = vpow.pop %v588
    %v590 = vadd.f32 %v587, 1.0
    %v591 = vadd.f32 %v589, 1.0
    %v592 = vrcp.pop %v590
    %v593 = vmul.f32 1.0, %v592
    %v594 = vrcp.pop %v591
    %v595 = vmul.f32 1.0, %v594
    %v597 = vlaneseq
    %v598 = vshrl.u32 %v597, 7
    %v599 = vsub.s32 0, %v598
    %v600 = vrot.slane %v440, %v599
    %v602 = vadd.f32 %v579, %v600
    %v603 = vmul.f32 %v593, %v602
    %v604 = vadd.f32 %v354, %v603
    %v605 = vtanh.pop %v604
    %v606 = vsub.f32 0.0, %v605
    %v607 = vmul.f32 %v595, %v606
    %v608 = vadd.f32 %v605, %v607
    %609 = vmatprep.subr.mxu0 %v393
    %610 = vmatpush1.msra.mxu0 %v392
    %611 = vmatprep.subr.mxu0 %v396
    %612 = vmatpush1.msra.mxu0 %v395
    %613 = vmatprep.subr.mxu0 %v399
    %614 = vmatpush1.msra.mxu0 %v398
    %615 = vmatprep.subr.mxu0 %v402
    %616 = vmatpush1.msra.mxu0 %v401
    %617 = vmatprep.subr.mxu0 %v405
    %618 = vmatpush1.msra.mxu0 %v404
    %619 = vmatprep.subr.mxu0 %v408
    %620 = vmatpush1.msra.mxu0 %v407
    %621 = vmatprep.subr.mxu0 %v411
    %622 = vmatpush1.msra.mxu0 %v410
    %623 = vmatprep.subr.mxu0 %v414
    %624 = vmatpush1.msra.mxu0 %v413
    %625 = vmatprep.subr.mxu0 %v417
    %626 = vmatpush1.msra.mxu0 %v416
    %627 = vmatprep.subr.mxu0 %v420
    %628 = vmatpush1.msra.mxu0 %v419
    %629 = vmatprep.subr.mxu0 %v423
    %630 = vmatpush1.msra.mxu0 %v422
    %631 = vmatprep.subr.mxu0 %v426
    %632 = vmatpush1.msra.mxu0 %v425
    %633 = vmatprep.subr.mxu0 %v429
    %634 = vmatpush1.msra.mxu0 %v428
    %635 = vmatprep.subr.mxu0 %v432
    %636 = vmatpush1.msra.mxu0 %v431
    %637 = vmatprep.subr.mxu0 %v435
    %638 = vmatpush1.msra.mxu0 %v434
    %639 = vmatprep.subr.mxu0 %v438
    %640 = vmatpush1.msra.mxu0 %v437
    %641 = vmatprep.subr.mxu0 0.0
    %642 = vmatpush1.msra.mxu0 0.0
    %643 = vmatprep.subr.mxu0 0.0
    %644 = vmatpush1.msra.mxu0 0.0
    %645 = vmatprep.subr.mxu0 0.0
    %646 = vmatpush1.msra.mxu0 0.0
    %647 = vmatprep.subr.mxu0 0.0
    %648 = vmatpush1.msra.mxu0 0.0
    %649 = vmatprep.subr.mxu0 0.0
    %650 = vmatpush1.msra.mxu0 0.0
    %651 = vmatprep.subr.mxu0 0.0
    %652 = vmatpush1.msra.mxu0 0.0
    %653 = vmatprep.subr.mxu0 0.0
    %654 = vmatpush1.msra.mxu0 0.0
    %655 = vmatprep.subr.mxu0 0.0
    %656 = vmatpush1.msra.mxu0 0.0
    %657 = vmatprep.subr.mxu0 0.0
    %658 = vmatpush1.msra.mxu0 0.0
    %659 = vmatprep.subr.mxu0 0.0
    %660 = vmatpush1.msra.mxu0 0.0
    %661 = vmatprep.subr.mxu0 0.0
    %662 = vmatpush1.msra.mxu0 0.0
    %663 = vmatprep.subr.mxu0 0.0
    %664 = vmatpush1.msra.mxu0 0.0
    %665 = vmatprep.subr.mxu0 0.0
    %666 = vmatpush1.msra.mxu0 0.0
    %667 = vmatprep.subr.mxu0 0.0
    %668 = vmatpush1.msra.mxu0 0.0
    %669 = vmatprep.subr.mxu0 0.0
    %670 = vmatpush1.msra.mxu0 0.0
    %671 = vmatprep.subr.mxu0 0.0
    %672 = vmatpush1.msra.mxu0 0.0
    %673 = vmatprep.mubr.f32.mxu0 0.0
    %674 = vmatmul.mubr.f32.gmra.mrb[0].mxu0 %v608
    %v675 = vpop.f32.mrb[0].mxu0
    %v676 = vadd.f32 0.0, %v675
    %v677 = vpop.f32.mrb[0].mxu0
    %v678 = vadd.f32 0.0, %v677
    %679 = vdwg.mxu0
    %680 = vmatprep.subr.mxu0 0.0
    %681 = vmatpush1.msra.mxu0 %v394
    %682 = vmatprep.subr.mxu0 0.0
    %683 = vmatpush1.msra.mxu0 %v397
    %684 = vmatprep.subr.mxu0 0.0
    %685 = vmatpush1.msra.mxu0 %v400
    %686 = vmatprep.subr.mxu0 0.0
    %687 = vmatpush1.msra.mxu0 %v403
    %688 = vmatprep.subr.mxu0 0.0
    %689 = vmatpush1.msra.mxu0 %v406
    %690 = vmatprep.subr.mxu0 0.0
    %691 = vmatpush1.msra.mxu0 %v409
    %692 = vmatprep.subr.mxu0 0.0
    %693 = vmatpush1.msra.mxu0 %v412
    %694 = vmatprep.subr.mxu0 0.0
    %695 = vmatpush1.msra.mxu0 %v415
    %696 = vmatprep.subr.mxu0 0.0
    %697 = vmatpush1.msra.mxu0 %v418
    %698 = vmatprep.subr.mxu0 0.0
    %699 = vmatpush1.msra.mxu0 %v421
    %700 = vmatprep.subr.mxu0 0.0
    %701 = vmatpush1.msra.mxu0 %v424
    %702 = vmatprep.subr.mxu0 0.0
    %703 = vmatpush1.msra.mxu0 %v427
    %704 = vmatprep.subr.mxu0 0.0
    %705 = vmatpush1.msra.mxu0 %v430
    %706 = vmatprep.subr.mxu0 0.0
    %707 = vmatpush1.msra.mxu0 %v433
    %708 = vmatprep.subr.mxu0 0.0
    %709 = vmatpush1.msra.mxu0 %v436
    %710 = vmatprep.subr.mxu0 0.0
    %711 = vmatpush1.msra.mxu0 %v439
    %712 = vmatprep.subr.mxu0 0.0
    %713 = vmatpush1.msra.mxu0 0.0
    %714 = vmatprep.subr.mxu0 0.0
    %715 = vmatpush1.msra.mxu0 0.0
    %716 = vmatprep.subr.mxu0 0.0
    %717 = vmatpush1.msra.mxu0 0.0
    %718 = vmatprep.subr.mxu0 0.0
    %719 = vmatpush1.msra.mxu0 0.0
    %720 = vmatprep.subr.mxu0 0.0
    %721 = vmatpush1.msra.mxu0 0.0
    %722 = vmatprep.subr.mxu0 0.0
    %723 = vmatpush1.msra.mxu0 0.0
    %724 = vmatprep.subr.mxu0 0.0
    %725 = vmatpush1.msra.mxu0 0.0
    %726 = vmatprep.subr.mxu0 0.0
    %727 = vmatpush1.msra.mxu0 0.0
    %728 = vmatprep.subr.mxu0 0.0
    %729 = vmatpush1.msra.mxu0 0.0
    %730 = vmatprep.subr.mxu0 0.0
    %731 = vmatpush1.msra.mxu0 0.0
    %732 = vmatprep.subr.mxu0 0.0
    %733 = vmatpush1.msra.mxu0 0.0
    %734 = vmatprep.subr.mxu0 0.0
    %735 = vmatpush1.msra.mxu0 0.0
    %736 = vmatprep.subr.mxu0 0.0
    %737 = vmatpush1.msra.mxu0 0.0
    %738 = vmatprep.subr.mxu0 0.0
    %739 = vmatpush1.msra.mxu0 0.0
    %740 = vmatprep.subr.mxu0 0.0
    %741 = vmatpush1.msra.mxu0 0.0
    %742 = vmatprep.subr.mxu0 0.0
    %743 = vmatpush1.msra.mxu0 0.0
    %744 = vmatprep.mubr.f32.mxu0 0.0
    %745 = vmatmul.mubr.f32.gmra.mrb[0].mxu0 %v608
    %v746 = vpop.f32.mrb[0].mxu0
    %v747 = vadd.f32 0.0, %v746
    %v748 = vpop.f32.mrb[0].mxu0
    %749 = vdwg.mxu0
    %v750 = vadd.f32 %v247, %v676
    %v751 = vadd.f32 %v249, %v678
    %v752 = vxor.u32 %v750, 2147483648
    %v753 = vxor.u32 %v751, 2147483648
    %v754 = vmul.f32 %v752, 1.442695
    %v755 = vpow.pop %v754
    %v756 = vmul.f32 %v753, 1.442695
    %v757 = vpow.pop %v756
    %v758 = vadd.f32 %v755, 1.0
    %v759 = vadd.f32 %v757, 1.0
    %v760 = vrcp.pop %v758
    %v761 = vmul.f32 1.0, %v760
    %v762 = vrcp.pop %v759
    %v763 = vmul.f32 1.0, %v762
    %v764 = vadd.f32 %v747, %v600
    %v765 = vmul.f32 %v761, %v764
    %v766 = vadd.f32 %v359, %v765
    %v767 = vtanh.pop %v766
    %v768 = vsub.f32 %v608, %v767
    %v769 = vmul.f32 %v763, %v768
    %v770 = vadd.f32 %v767, %v769
    %771 = vmatprep.subr.mxu0 %v393
    %772 = vmatpush1.msra.mxu0 %v392
    %773 = vmatprep.subr.mxu0 %v396
    %774 = vmatpush1.msra.mxu0 %v395
    %775 = vmatprep.subr.mxu0 %v399
    %776 = vmatpush1.msra.mxu0 %v398
    %777 = vmatprep.subr.mxu0 %v402
    %778 = vmatpush1.msra.mxu0 %v401
    %779 = vmatprep.subr.mxu0 %v405
    %780 = vmatpush1.msra.mxu0 %v404
    %781 = vmatprep.subr.mxu0 %v408
    %782 = vmatpush1.msra.mxu0 %v407
    %783 = vmatprep.subr.mxu0 %v411
    %784 = vmatpush1.msra.mxu0 %v410
    %785 = vmatprep.subr.mxu0 %v414
    %786 = vmatpush1.msra.mxu0 %v413
    %787 = vmatprep.subr.mxu0 %v417
    %788 = vmatpush1.msra.mxu0 %v416
    %789 = vmatprep.subr.mxu0 %v420
    %790 = vmatpush1.msra.mxu0 %v419
    %791 = vmatprep.subr.mxu0 %v423
    %792 = vmatpush1.msra.mxu0 %v422
    %793 = vmatprep.subr.mxu0 %v426
    %794 = vmatpush1.msra.mxu0 %v425
    %795 = vmatprep.subr.mxu0 %v429
    %796 = vmatpush1.msra.mxu0 %v428
    %797 = vmatprep.subr.mxu0 %v432
    %798 = vmatpush1.msra.mxu0 %v431
    %799 = vmatprep.subr.mxu0 %v435
    %800 = vmatpush1.msra.mxu0 %v434
    %801 = vmatprep.subr.mxu0 %v438
    %802 = vmatpush1.msra.mxu0 %v437
    %803 = vmatprep.subr.mxu0 0.0
    %804 = vmatpush1.msra.mxu0 0.0
    %805 = vmatprep.subr.mxu0 0.0
    %806 = vmatpush1.msra.mxu0 0.0
    %807 = vmatprep.subr.mxu0 0.0
    %808 = vmatpush1.msra.mxu0 0.0
    %809 = vmatprep.subr.mxu0 0.0
    %810 = vmatpush1.msra.mxu0 0.0
    %811 = vmatprep.subr.mxu0 0.0
    %812 = vmatpush1.msra.mxu0 0.0
    %813 = vmatprep.subr.mxu0 0.0
    %814 = vmatpush1.msra.mxu0 0.0
    %815 = vmatprep.subr.mxu0 0.0
    %816 = vmatpush1.msra.mxu0 0.0
    %817 = vmatprep.subr.mxu0 0.0
    %818 = vmatpush1.msra.mxu0 0.0
    %819 = vmatprep.subr.mxu0 0.0
    %820 = vmatpush1.msra.mxu0 0.0
    %821 = vmatprep.subr.mxu0 0.0
    %822 = vmatpush1.msra.mxu0 0.0
    %823 = vmatprep.subr.mxu0 0.0
    %824 = vmatpush1.msra.mxu0 0.0
    %825 = vmatprep.subr.mxu0 0.0
    %826 = vmatpush1.msra.mxu0 0.0
    %827 = vmatprep.subr.mxu0 0.0
    %828 = vmatpush1.msra.mxu0 0.0
    %829 = vmatprep.subr.mxu0 0.0
    %830 = vmatpush1.msra.mxu0 0.0
    %831 = vmatprep.subr.mxu0 0.0
    %832 = vmatpush1.msra.mxu0 0.0
    %833 = vmatprep.subr.mxu0 0.0
    %834 = vmatpush1.msra.mxu0 0.0
    %835 = vmatprep.mubr.f32.mxu0 0.0
    %836 = vmatmul.mubr.f32.gmra.mrb[0].mxu0 %v770
    %v837 = vpop.f32.mrb[0].mxu0
    %v838 = vadd.f32 0.0, %v837
    %v839 = vpop.f32.mrb[0].mxu0
    %v840 = vadd.f32 0.0, %v839
    %841 = vdwg.mxu0
    %842 = vmatprep.subr.mxu0 0.0
    %843 = vmatpush1.msra.mxu0 %v394
    %844 = vmatprep.subr.mxu0 0.0
    %845 = vmatpush1.msra.mxu0 %v397
    %846 = vmatprep.subr.mxu0 0.0
    %847 = vmatpush1.msra.mxu0 %v400
    %848 = vmatprep.subr.mxu0 0.0
    %849 = vmatpush1.msra.mxu0 %v403
    %850 = vmatprep.subr.mxu0 0.0
    %851 = vmatpush1.msra.mxu0 %v406
    %852 = vmatprep.subr.mxu0 0.0
    %853 = vmatpush1.msra.mxu0 %v409
    %854 = vmatprep.subr.mxu0 0.0
    %855 = vmatpush1.msra.mxu0 %v412
    %856 = vmatprep.subr.mxu0 0.0
    %857 = vmatpush1.msra.mxu0 %v415
    %858 = vmatprep.subr.mxu0 0.0
    %859 = vmatpush1.msra.mxu0 %v418
    %860 = vmatprep.subr.mxu0 0.0
    %861 = vmatpush1.msra.mxu0 %v421
    %862 = vmatprep.subr.mxu0 0.0
    %863 = vmatpush1.msra.mxu0 %v424
    %864 = vmatprep.subr.mxu0 0.0
    %865 = vmatpush1.msra.mxu0 %v427
    %866 = vmatprep.subr.mxu0 0.0
    %867 = vmatpush1.msra.mxu0 %v430
    %868 = vmatprep.subr.mxu0 0.0
    %869 = vmatpush1.msra.mxu0 %v433
    %870 = vmatprep.subr.mxu0 0.0
    %871 = vmatpush1.msra.mxu0 %v436
    %872 = vmatprep.subr.mxu0 0.0
    %873 = vmatpush1.msra.mxu0 %v439
    %874 = vmatprep.subr.mxu0 0.0
    %875 = vmatpush1.msra.mxu0 0.0
    %876 = vmatprep.subr.mxu0 0.0
    %877 = vmatpush1.msra.mxu0 0.0
    %878 = vmatprep.subr.mxu0 0.0
    %879 = vmatpush1.msra.mxu0 0.0
    %880 = vmatprep.subr.mxu0 0.0
    %881 = vmatpush1.msra.mxu0 0.0
    %882 = vmatprep.subr.mxu0 0.0
    %883 = vmatpush1.msra.mxu0 0.0
    %884 = vmatprep.subr.mxu0 0.0
    %885 = vmatpush1.msra.mxu0 0.0
    %886 = vmatprep.subr.mxu0 0.0
    %887 = vmatpush1.msra.mxu0 0.0
    %888 = vmatprep.subr.mxu0 0.0
    %889 = vmatpush1.msra.mxu0 0.0
    %890 = vmatprep.subr.mxu0 0.0
    %891 = vmatpush1.msra.mxu0 0.0
    %892 = vmatprep.subr.mxu0 0.0
    %893 = vmatpush1.msra.mxu0 0.0
    %894 = vmatprep.subr.mxu0 0.0
    %895 = vmatpush1.msra.mxu0 0.0
    %896 = vmatprep.subr.mxu0 0.0
    %897 = vmatpush1.msra.mxu0 0.0
    %898 = vmatprep.subr.mxu0 0.0
    %899 = vmatpush1.msra.mxu0 0.0
    %900 = vmatprep.subr.mxu0 0.0
    %901 = vmatpush1.msra.mxu0 0.0
    %902 = vmatprep.subr.mxu0 0.0
    %903 = vmatpush1.msra.mxu0 0.0
    %904 = vmatprep.subr.mxu0 0.0
    %905 = vmatpush1.msra.mxu0 0.0
    %906 = vmatprep.mubr.f32.mxu0 0.0
    %907 = vmatmul.mubr.f32.gmra.mrb[0].mxu0 %v770
    %v908 = vpop.f32.mrb[0].mxu0
    %v909 = vadd.f32 0.0, %v908
    %v910 = vpop.f32.mrb[0].mxu0
    %911 = vdwg.mxu0
    %v912 = vadd.f32 %v253, %v838
    %v913 = vadd.f32 %v255, %v840
    %v914 = vxor.u32 %v912, 2147483648
    %v915 = vxor.u32 %v913, 2147483648
    %v916 = vmul.f32 %v914, 1.442695
    %v917 = vpow.pop %v916
    %v918 = vmul.f32 %v915, 1.442695
    %v919 = vpow.pop %v918
    %v920 = vadd.f32 %v917, 1.0
    %v921 = vadd.f32 %v919, 1.0
    %v922 = vrcp.pop %v920
    %v923 = vmul.f32 1.0, %v922
    %v924 = vrcp.pop %v921
    %v925 = vmul.f32 1.0, %v924
    %v926 = vadd.f32 %v909, %v600
    %v927 = vmul.f32 %v923, %v926
    %v928 = vadd.f32 %v364, %v927
    %v929 = vtanh.pop %v928
    %v930 = vsub.f32 %v770, %v929
    %v931 = vmul.f32 %v925, %v930
    %v932 = vadd.f32 %v929, %v931
    %933 = vmatprep.subr.mxu0 %v393
    %934 = vmatpush1.msra.mxu0 %v392
    %935 = vmatprep.subr.mxu0 %v396
    %936 = vmatpush1.msra.mxu0 %v395
    %937 = vmatprep.subr.mxu0 %v399
    %938 = vmatpush1.msra.mxu0 %v398
    %939 = vmatprep.subr.mxu0 %v402
    %940 = vmatpush1.msra.mxu0 %v401
    %941 = vmatprep.subr.mxu0 %v405
    %942 = vmatpush1.msra.mxu0 %v404
    %943 = vmatprep.subr.mxu0 %v408
    %944 = vmatpush1.msra.mxu0 %v407
    %945 = vmatprep.subr.mxu0 %v411
    %946 = vmatpush1.msra.mxu0 %v410
    %947 = vmatprep.subr.mxu0 %v414
    %948 = vmatpush1.msra.mxu0 %v413
    %949 = vmatprep.subr.mxu0 %v417
    %950 = vmatpush1.msra.mxu0 %v416
    %951 = vmatprep.subr.mxu0 %v420
    %952 = vmatpush1.msra.mxu0 %v419
    %953 = vmatprep.subr.mxu0 %v423
    %954 = vmatpush1.msra.mxu0 %v422
    %955 = vmatprep.subr.mxu0 %v426
    %956 = vmatpush1.msra.mxu0 %v425
    %957 = vmatprep.subr.mxu0 %v429
    %958 = vmatpush1.msra.mxu0 %v428
    %959 = vmatprep.subr.mxu0 %v432
    %960 = vmatpush1.msra.mxu0 %v431
    %961 = vmatprep.subr.mxu0 %v435
    %962 = vmatpush1.msra.mxu0 %v434
    %963 = vmatprep.subr.mxu0 %v438
    %964 = vmatpush1.msra.mxu0 %v437
    %965 = vmatprep.subr.mxu0 0.0
    %966 = vmatpush1.msra.mxu0 0.0
    %967 = vmatprep.subr.mxu0 0.0
    %968 = vmatpush1.msra.mxu0 0.0
    %969 = vmatprep.subr.mxu0 0.0
    %970 = vmatpush1.msra.mxu0 0.0
    %971 = vmatprep.subr.mxu0 0.0
    %972 = vmatpush1.msra.mxu0 0.0
    %973 = vmatprep.subr.mxu0 0.0
    %974 = vmatpush1.msra.mxu0 0.0
    %975 = vmatprep.subr.mxu0 0.0
    %976 = vmatpush1.msra.mxu0 0.0
    %977 = vmatprep.subr.mxu0 0.0
    %978 = vmatpush1.msra.mxu0 0.0
    %979 = vmatprep.subr.mxu0 0.0
    %980 = vmatpush1.msra.mxu0 0.0
    %981 = vmatprep.subr.mxu0 0.0
    %982 = vmatpush1.msra.mxu0 0.0
    %983 = vmatprep.subr.mxu0 0.0
    %984 = vmatpush1.msra.mxu0 0.0
    %985 = vmatprep.subr.mxu0 0.0
    %986 = vmatpush1.msra.mxu0 0.0
    %987 = vmatprep.subr.mxu0 0.0
    %988 = vmatpush1.msra.mxu0 0.0
    %989 = vmatprep.subr.mxu0 0.0
    %990 = vmatpush1.msra.mxu0 0.0
    %991 = vmatprep.subr.mxu0 0.0
    %992 = vmatpush1.msra.mxu0 0.0
    %993 = vmatprep.subr.mxu0 0.0
    %994 = vmatpush1.msra.mxu0 0.0
    %995 = vmatprep.subr.mxu0 0.0
    %996 = vmatpush1.msra.mxu0 0.0
    %997 = vmatprep.mubr.f32.mxu0 0.0
    %998 = vmatmul.mubr.f32.gmra.mrb[0].mxu0 %v932
    %v999 = vpop.f32.mrb[0].mxu0
    %v1000 = vadd.f32 0.0, %v999
    %v1001 = vpop.f32.mrb[0].mxu0
    %v1002 = vadd.f32 0.0, %v1001
    %1003 = vdwg.mxu0
    %1004 = vmatprep.subr.mxu0 0.0
    %1005 = vmatpush1.msra.mxu0 %v394
    %1006 = vmatprep.subr.mxu0 0.0
    %1007 = vmatpush1.msra.mxu0 %v397
    %1008 = vmatprep.subr.mxu0 0.0
    %1009 = vmatpush1.msra.mxu0 %v400
    %1010 = vmatprep.subr.mxu0 0.0
    %1011 = vmatpush1.msra.mxu0 %v403
    %1012 = vmatprep.subr.mxu0 0.0
    %1013 = vmatpush1.msra.mxu0 %v406
    %1014 = vmatprep.subr.mxu0 0.0
    %1015 = vmatpush1.msra.mxu0 %v409
    %1016 = vmatprep.subr.mxu0 0.0
    %1017 = vmatpush1.msra.mxu0 %v412
    %1018 = vmatprep.subr.mxu0 0.0
    %1019 = vmatpush1.msra.mxu0 %v415
    %1020 = vmatprep.subr.mxu0 0.0
    %1021 = vmatpush1.msra.mxu0 %v418
    %1022 = vmatprep.subr.mxu0 0.0
    %1023 = vmatpush1.msra.mxu0 %v421
    %1024 = vmatprep.subr.mxu0 0.0
    %1025 = vmatpush1.msra.mxu0 %v424
    %1026 = vmatprep.subr.mxu0 0.0
    %1027 = vmatpush1.msra.mxu0 %v427
    %1028 = vmatprep.subr.mxu0 0.0
    %1029 = vmatpush1.msra.mxu0 %v430
    %1030 = vmatprep.subr.mxu0 0.0
    %1031 = vmatpush1.msra.mxu0 %v433
    %1032 = vmatprep.subr.mxu0 0.0
    %1033 = vmatpush1.msra.mxu0 %v436
    %1034 = vmatprep.subr.mxu0 0.0
    %1035 = vmatpush1.msra.mxu0 %v439
    %1036 = vmatprep.subr.mxu0 0.0
    %1037 = vmatpush1.msra.mxu0 0.0
    %1038 = vmatprep.subr.mxu0 0.0
    %1039 = vmatpush1.msra.mxu0 0.0
    %1040 = vmatprep.subr.mxu0 0.0
    %1041 = vmatpush1.msra.mxu0 0.0
    %1042 = vmatprep.subr.mxu0 0.0
    %1043 = vmatpush1.msra.mxu0 0.0
    %1044 = vmatprep.subr.mxu0 0.0
    %1045 = vmatpush1.msra.mxu0 0.0
    %1046 = vmatprep.subr.mxu0 0.0
    %1047 = vmatpush1.msra.mxu0 0.0
    %1048 = vmatprep.subr.mxu0 0.0
    %1049 = vmatpush1.msra.mxu0 0.0
    %1050 = vmatprep.subr.mxu0 0.0
    %1051 = vmatpush1.msra.mxu0 0.0
    %1052 = vmatprep.subr.mxu0 0.0
    %1053 = vmatpush1.msra.mxu0 0.0
    %1054 = vmatprep.subr.mxu0 0.0
    %1055 = vmatpush1.msra.mxu0 0.0
    %1056 = vmatprep.subr.mxu0 0.0
    %1057 = vmatpush1.msra.mxu0 0.0
    %1058 = vmatprep.subr.mxu0 0.0
    %1059 = vmatpush1.msra.mxu0 0.0
    %1060 = vmatprep.subr.mxu0 0.0
    %1061 = vmatpush1.msra.mxu0 0.0
    %1062 = vmatprep.subr.mxu0 0.0
    %1063 = vmatpush1.msra.mxu0 0.0
    %1064 = vmatprep.subr.mxu0 0.0
    %1065 = vmatpush1.msra.mxu0 0.0
    %1066 = vmatprep.subr.mxu0 0.0
    %1067 = vmatpush1.msra.mxu0 0.0
    %1068 = vmatprep.mubr.f32.mxu0 0.0
    %1069 = vmatmul.mubr.f32.gmra.mrb[0].mxu0 %v932
    %v1070 = vpop.f32.mrb[0].mxu0
    %v1071 = vadd.f32 0.0, %v1070
    %v1072 = vpop.f32.mrb[0].mxu0
    %1073 = vdwg.mxu0
    %v1074 = vadd.f32 %v259, %v1000
    %v1075 = vadd.f32 %v261, %v1002
    %v1076 = vxor.u32 %v1074, 2147483648
    %v1077 = vxor.u32 %v1075, 2147483648
    %v1078 = vmul.f32 %v1076, 1.442695
    %v1079 = vpow.pop %v1078
    %v1080 = vmul.f32 %v1077, 1.442695
    %v1081 = vpow.pop %v1080
    %v1082 = vadd.f32 %v1079, 1.0
    %v1083 = vadd.f32 %v1081, 1.0
    %v1084 = vrcp.pop %v1082
    %v1085 = vmul.f32 1.0, %v1084
    %v1086 = vrcp.pop %v1083
    %v1087 = vmul.f32 1.0, %v1086
    %v1088 = vadd.f32 %v1071, %v600
    %v1089 = vmul.f32 %v1085, %v1088
    %v1090 = vadd.f32 %v369, %v1089
    %v1091 = vtanh.pop %v1090
    %v1092 = vsub.f32 %v932, %v1091
    %v1093 = vmul.f32 %v1087, %v1092
    %v1094 = vadd.f32 %v1091, %v1093
    %1095 = vmatprep.subr.mxu0 %v393
    %1096 = vmatpush1.msra.mxu0 %v392
    %1097 = vmatprep.subr.mxu0 %v396
    %1098 = vmatpush1.msra.mxu0 %v395
    %1099 = vmatprep.subr.mxu0 %v399
    %1100 = vmatpush1.msra.mxu0 %v398
    %1101 = vmatprep.subr.mxu0 %v402
    %1102 = vmatpush1.msra.mxu0 %v401
    %1103 = vmatprep.subr.mxu0 %v405
    %1104 = vmatpush1.msra.mxu0 %v404
    %1105 = vmatprep.subr.mxu0 %v408
    %1106 = vmatpush1.msra.mxu0 %v407
    %1107 = vmatprep.subr.mxu0 %v411
    %1108 = vmatpush1.msra.mxu0 %v410
    %1109 = vmatprep.subr.mxu0 %v414
    %1110 = vmatpush1.msra.mxu0 %v413
    %1111 = vmatprep.subr.mxu0 %v417
    %1112 = vmatpush1.msra.mxu0 %v416
    %1113 = vmatprep.subr.mxu0 %v420
    %1114 = vmatpush1.msra.mxu0 %v419
    %1115 = vmatprep.subr.mxu0 %v423
    %1116 = vmatpush1.msra.mxu0 %v422
    %1117 = vmatprep.subr.mxu0 %v426
    %1118 = vmatpush1.msra.mxu0 %v425
    %1119 = vmatprep.subr.mxu0 %v429
    %1120 = vmatpush1.msra.mxu0 %v428
    %1121 = vmatprep.subr.mxu0 %v432
    %1122 = vmatpush1.msra.mxu0 %v431
    %1123 = vmatprep.subr.mxu0 %v435
    %1124 = vmatpush1.msra.mxu0 %v434
    %1125 = vmatprep.subr.mxu0 %v438
    %1126 = vmatpush1.msra.mxu0 %v437
    %1127 = vmatprep.subr.mxu0 0.0
    %1128 = vmatpush1.msra.mxu0 0.0
    %1129 = vmatprep.subr.mxu0 0.0
    %1130 = vmatpush1.msra.mxu0 0.0
    %1131 = vmatprep.subr.mxu0 0.0
    %1132 = vmatpush1.msra.mxu0 0.0
    %1133 = vmatprep.subr.mxu0 0.0
    %1134 = vmatpush1.msra.mxu0 0.0
    %1135 = vmatprep.subr.mxu0 0.0
    %1136 = vmatpush1.msra.mxu0 0.0
    %1137 = vmatprep.subr.mxu0 0.0
    %1138 = vmatpush1.msra.mxu0 0.0
    %1139 = vmatprep.subr.mxu0 0.0
    %1140 = vmatpush1.msra.mxu0 0.0
    %1141 = vmatprep.subr.mxu0 0.0
    %1142 = vmatpush1.msra.mxu0 0.0
    %1143 = vmatprep.subr.mxu0 0.0
    %1144 = vmatpush1.msra.mxu0 0.0
    %1145 = vmatprep.subr.mxu0 0.0
    %1146 = vmatpush1.msra.mxu0 0.0
    %1147 = vmatprep.subr.mxu0 0.0
    %1148 = vmatpush1.msra.mxu0 0.0
    %1149 = vmatprep.subr.mxu0 0.0
    %1150 = vmatpush1.msra.mxu0 0.0
    %1151 = vmatprep.subr.mxu0 0.0
    %1152 = vmatpush1.msra.mxu0 0.0
    %1153 = vmatprep.subr.mxu0 0.0
    %1154 = vmatpush1.msra.mxu0 0.0
    %1155 = vmatprep.subr.mxu0 0.0
    %1156 = vmatpush1.msra.mxu0 0.0
    %1157 = vmatprep.subr.mxu0 0.0
    %1158 = vmatpush1.msra.mxu0 0.0
    %1159 = vmatprep.mubr.f32.mxu0 0.0
    %1160 = vmatmul.mubr.f32.gmra.mrb[0].mxu0 %v1094
    %v1161 = vpop.f32.mrb[0].mxu0
    %v1162 = vadd.f32 0.0, %v1161
    %v1163 = vpop.f32.mrb[0].mxu0
    %v1164 = vadd.f32 0.0, %v1163
    %1165 = vdwg.mxu0
    %1166 = vmatprep.subr.mxu0 0.0
    %1167 = vmatpush1.msra.mxu0 %v394
    %1168 = vmatprep.subr.mxu0 0.0
    %1169 = vmatpush1.msra.mxu0 %v397
    %1170 = vmatprep.subr.mxu0 0.0
    %1171 = vmatpush1.msra.mxu0 %v400
    %1172 = vmatprep.subr.mxu0 0.0
    %1173 = vmatpush1.msra.mxu0 %v403
    %1174 = vmatprep.subr.mxu0 0.0
    %1175 = vmatpush1.msra.mxu0 %v406
    %1176 = vmatprep.subr.mxu0 0.0
    %1177 = vmatpush1.msra.mxu0 %v409
    %1178 = vmatprep.subr.mxu0 0.0
    %1179 = vmatpush1.msra.mxu0 %v412
    %1180 = vmatprep.subr.mxu0 0.0
    %1181 = vmatpush1.msra.mxu0 %v415
    %1182 = vmatprep.subr.mxu0 0.0
    %1183 = vmatpush1.msra.mxu0 %v418
    %1184 = vmatprep.subr.mxu0 0.0
    %1185 = vmatpush1.msra.mxu0 %v421
    %1186 = vmatprep.subr.mxu0 0.0
    %1187 = vmatpush1.msra.mxu0 %v424
    %1188 = vmatprep.subr.mxu0 0.0
    %1189 = vmatpush1.msra.mxu0 %v427
    %1190 = vmatprep.subr.mxu0 0.0
    %1191 = vmatpush1.msra.mxu0 %v430
    %1192 = vmatprep.subr.mxu0 0.0
    %1193 = vmatpush1.msra.mxu0 %v433
    %1194 = vmatprep.subr.mxu0 0.0
    %1195 = vmatpush1.msra.mxu0 %v436
    %1196 = vmatprep.subr.mxu0 0.0
    %1197 = vmatpush1.msra.mxu0 %v439
    %1198 = vmatprep.subr.mxu0 0.0
    %1199 = vmatpush1.msra.mxu0 0.0
    %1200 = vmatprep.subr.mxu0 0.0
    %1201 = vmatpush1.msra.mxu0 0.0
    %1202 = vmatprep.subr.mxu0 0.0
    %1203 = vmatpush1.msra.mxu0 0.0
    %1204 = vmatprep.subr.mxu0 0.0
    %1205 = vmatpush1.msra.mxu0 0.0
    %1206 = vmatprep.subr.mxu0 0.0
    %1207 = vmatpush1.msra.mxu0 0.0
    %1208 = vmatprep.subr.mxu0 0.0
    %1209 = vmatpush1.msra.mxu0 0.0
    %1210 = vmatprep.subr.mxu0 0.0
    %1211 = vmatpush1.msra.mxu0 0.0
    %1212 = vmatprep.subr.mxu0 0.0
    %1213 = vmatpush1.msra.mxu0 0.0
    %1214 = vmatprep.subr.mxu0 0.0
    %1215 = vmatpush1.msra.mxu0 0.0
    %1216 = vmatprep.subr.mxu0 0.0
    %1217 = vmatpush1.msra.mxu0 0.0
    %1218 = vmatprep.subr.mxu0 0.0
    %1219 = vmatpush1.msra.mxu0 0.0
    %1220 = vmatprep.subr.mxu0 0.0
    %1221 = vmatpush1.msra.mxu0 0.0
    %1222 = vmatprep.subr.mxu0 0.0
    %1223 = vmatpush1.msra.mxu0 0.0
    %1224 = vmatprep.subr.mxu0 0.0
    %1225 = vmatpush1.msra.mxu0 0.0
    %1226 = vmatprep.subr.mxu0 0.0
    %1227 = vmatpush1.msra.mxu0 0.0
    %1228 = vmatprep.subr.mxu0 0.0
    %1229 = vmatpush1.msra.mxu0 0.0
    %1230 = vmatprep.mubr.f32.mxu0 0.0
    %1231 = vmatmul.mubr.f32.gmra.mrb[0].mxu0 %v1094
    %v1232 = vpop.f32.mrb[0].mxu0
    %v1233 = vadd.f32 0.0, %v1232
    %v1234 = vpop.f32.mrb[0].mxu0
    %1235 = vdwg.mxu0
    %v1236 = vadd.f32 %v265, %v1162
    %v1237 = vadd.f32 %v267, %v1164
    %v1238 = vxor.u32 %v1236, 2147483648
    %v1239 = vxor.u32 %v1237, 2147483648
    %v1240 = vmul.f32 %v1238, 1.442695
    %v1241 = vpow.pop %v1240
    %v1242 = vmul.f32 %v1239, 1.442695
    %v1243 = vpow.pop %v1242
    %v1244 = vadd.f32 %v1241, 1.0
    %v1245 = vadd.f32 %v1243, 1.0
    %v1246 = vrcp.pop %v1244
    %v1247 = vmul.f32 1.0, %v1246
    %v1248 = vrcp.pop %v1245
    %v1249 = vmul.f32 1.0, %v1248
    %v1250 = vadd.f32 %v1233, %v600
    %v1251 = vmul.f32 %v1247, %v1250
    %v1252 = vadd.f32 %v374, %v1251
    %v1253 = vtanh.pop %v1252
    %v1254 = vsub.f32 %v1094, %v1253
    %v1255 = vmul.f32 %v1249, %v1254
    %v1256 = vadd.f32 %v1253, %v1255
    %1257 = vmatprep.subr.mxu0 %v393
    %1258 = vmatpush1.msra.mxu0 %v392
    %1259 = vmatprep.subr.mxu0 %v396
    %1260 = vmatpush1.msra.mxu0 %v395
    %1261 = vmatprep.subr.mxu0 %v399
    %1262 = vmatpush1.msra.mxu0 %v398
    %1263 = vmatprep.subr.mxu0 %v402
    %1264 = vmatpush1.msra.mxu0 %v401
    %1265 = vmatprep.subr.mxu0 %v405
    %1266 = vmatpush1.msra.mxu0 %v404
    %1267 = vmatprep.subr.mxu0 %v408
    %1268 = vmatpush1.msra.mxu0 %v407
    %1269 = vmatprep.subr.mxu0 %v411
    %1270 = vmatpush1.msra.mxu0 %v410
    %1271 = vmatprep.subr.mxu0 %v414
    %1272 = vmatpush1.msra.mxu0 %v413
    %1273 = vmatprep.subr.mxu0 %v417
    %1274 = vmatpush1.msra.mxu0 %v416
    %1275 = vmatprep.subr.mxu0 %v420
    %1276 = vmatpush1.msra.mxu0 %v419
    %1277 = vmatprep.subr.mxu0 %v423
    %1278 = vmatpush1.msra.mxu0 %v422
    %1279 = vmatprep.subr.mxu0 %v426
    %1280 = vmatpush1.msra.mxu0 %v425
    %1281 = vmatprep.subr.mxu0 %v429
    %1282 = vmatpush1.msra.mxu0 %v428
    %1283 = vmatprep.subr.mxu0 %v432
    %1284 = vmatpush1.msra.mxu0 %v431
    %1285 = vmatprep.subr.mxu0 %v435
    %1286 = vmatpush1.msra.mxu0 %v434
    %1287 = vmatprep.subr.mxu0 %v438
    %1288 = vmatpush1.msra.mxu0 %v437
    %1289 = vmatprep.subr.mxu0 0.0
    %1290 = vmatpush1.msra.mxu0 0.0
    %1291 = vmatprep.subr.mxu0 0.0
    %1292 = vmatpush1.msra.mxu0 0.0
    %1293 = vmatprep.subr.mxu0 0.0
    %1294 = vmatpush1.msra.mxu0 0.0
    %1295 = vmatprep.subr.mxu0 0.0
    %1296 = vmatpush1.msra.mxu0 0.0
    %1297 = vmatprep.subr.mxu0 0.0
    %1298 = vmatpush1.msra.mxu0 0.0
    %1299 = vmatprep.subr.mxu0 0.0
    %1300 = vmatpush1.msra.mxu0 0.0
    %1301 = vmatprep.subr.mxu0 0.0
    %1302 = vmatpush1.msra.mxu0 0.0
    %1303 = vmatprep.subr.mxu0 0.0
    %1304 = vmatpush1.msra.mxu0 0.0
    %1305 = vmatprep.subr.mxu0 0.0
    %1306 = vmatpush1.msra.mxu0 0.0
    %1307 = vmatprep.subr.mxu0 0.0
    %1308 = vmatpush1.msra.mxu0 0.0
    %1309 = vmatprep.subr.mxu0 0.0
    %1310 = vmatpush1.msra.mxu0 0.0
    %1311 = vmatprep.subr.mxu0 0.0
    %1312 = vmatpush1.msra.mxu0 0.0
    %1313 = vmatprep.subr.mxu0 0.0
    %1314 = vmatpush1.msra.mxu0 0.0
    %1315 = vmatprep.subr.mxu0 0.0
    %1316 = vmatpush1.msra.mxu0 0.0
    %1317 = vmatprep.subr.mxu0 0.0
    %1318 = vmatpush1.msra.mxu0 0.0
    %1319 = vmatprep.subr.mxu0 0.0
    %1320 = vmatpush1.msra.mxu0 0.0
    %1321 = vmatprep.mubr.f32.mxu0 0.0
    %1322 = vmatmul.mubr.f32.gmra.mrb[0].mxu0 %v1256
    %v1323 = vpop.f32.mrb[0].mxu0
    %v1324 = vadd.f32 0.0, %v1323
    %v1325 = vpop.f32.mrb[0].mxu0
    %v1326 = vadd.f32 0.0, %v1325
    %1327 = vdwg.mxu0
    %1328 = vmatprep.subr.mxu0 0.0
    %1329 = vmatpush1.msra.mxu0 %v394
    %1330 = vmatprep.subr.mxu0 0.0
    %1331 = vmatpush1.msra.mxu0 %v397
    %1332 = vmatprep.subr.mxu0 0.0
    %1333 = vmatpush1.msra.mxu0 %v400
    %1334 = vmatprep.subr.mxu0 0.0
    %1335 = vmatpush1.msra.mxu0 %v403
    %1336 = vmatprep.subr.mxu0 0.0
    %1337 = vmatpush1.msra.mxu0 %v406
    %1338 = vmatprep.subr.mxu0 0.0
    %1339 = vmatpush1.msra.mxu0 %v409
    %1340 = vmatprep.subr.mxu0 0.0
    %1341 = vmatpush1.msra.mxu0 %v412
    %1342 = vmatprep.subr.mxu0 0.0
    %1343 = vmatpush1.msra.mxu0 %v415
    %1344 = vmatprep.subr.mxu0 0.0
    %1345 = vmatpush1.msra.mxu0 %v418
    %1346 = vmatprep.subr.mxu0 0.0
    %1347 = vmatpush1.msra.mxu0 %v421
    %1348 = vmatprep.subr.mxu0 0.0
    %1349 = vmatpush1.msra.mxu0 %v424
    %1350 = vmatprep.subr.mxu0 0.0
    %1351 = vmatpush1.msra.mxu0 %v427
    %1352 = vmatprep.subr.mxu0 0.0
    %1353 = vmatpush1.msra.mxu0 %v430
    %1354 = vmatprep.subr.mxu0 0.0
    %1355 = vmatpush1.msra.mxu0 %v433
    %1356 = vmatprep.subr.mxu0 0.0
    %1357 = vmatpush1.msra.mxu0 %v436
    %1358 = vmatprep.subr.mxu0 0.0
    %1359 = vmatpush1.msra.mxu0 %v439
    %1360 = vmatprep.subr.mxu0 0.0
    %1361 = vmatpush1.msra.mxu0 0.0
    %1362 = vmatprep.subr.mxu0 0.0
    %1363 = vmatpush1.msra.mxu0 0.0
    %1364 = vmatprep.subr.mxu0 0.0
    %1365 = vmatpush1.msra.mxu0 0.0
    %1366 = vmatprep.subr.mxu0 0.0
    %1367 = vmatpush1.msra.mxu0 0.0
    %1368 = vmatprep.subr.mxu0 0.0
    %1369 = vmatpush1.msra.mxu0 0.0
    %1370 = vmatprep.subr.mxu0 0.0
    %1371 = vmatpush1.msra.mxu0 0.0
    %1372 = vmatprep.subr.mxu0 0.0
    %1373 = vmatpush1.msra.mxu0 0.0
    %1374 = vmatprep.subr.mxu0 0.0
    %1375 = vmatpush1.msra.mxu0 0.0
    %1376 = vmatprep.subr.mxu0 0.0
    %1377 = vmatpush1.msra.mxu0 0.0
    %1378 = vmatprep.subr.mxu0 0.0
    %1379 = vmatpush1.msra.mxu0 0.0
    %1380 = vmatprep.subr.mxu0 0.0
    %1381 = vmatpush1.msra.mxu0 0.0
    %1382 = vmatprep.subr.mxu0 0.0
    %1383 = vmatpush1.msra.mxu0 0.0
    %1384 = vmatprep.subr.mxu0 0.0
    %1385 = vmatpush1.msra.mxu0 0.0
    %1386 = vmatprep.subr.mxu0 0.0
    %1387 = vmatpush1.msra.mxu0 0.0
    %1388 = vmatprep.subr.mxu0 0.0
    %1389 = vmatpush1.msra.mxu0 0.0
    %1390 = vmatprep.subr.mxu0 0.0
    %1391 = vmatpush1.msra.mxu0 0.0
    %1392 = vmatprep.mubr.f32.mxu0 0.0
    %1393 = vmatmul.mubr.f32.gmra.mrb[0].mxu0 %v1256
    %v1394 = vpop.f32.mrb[0].mxu0
    %v1395 = vadd.f32 0.0, %v1394
    %v1396 = vpop.f32.mrb[0].mxu0
    %1397 = vdwg.mxu0
    %v1398 = vadd.f32 %v271, %v1324
    %v1399 = vadd.f32 %v273, %v1326
    %v1400 = vxor.u32 %v1398, 2147483648
    %v1401 = vxor.u32 %v1399, 2147483648
    %v1402 = vmul.f32 %v1400, 1.442695
    %v1403 = vpow.pop %v1402
    %v1404 = vmul.f32 %v1401, 1.442695
    %v1405 = vpow.pop %v1404
    %v1406 = vadd.f32 %v1403, 1.0
    %v1407 = vadd.f32 %v1405, 1.0
    %v1408 = vrcp.pop %v1406
    %v1409 = vmul.f32 1.0, %v1408
    %v1410 = vrcp.pop %v1407
    %v1411 = vmul.f32 1.0, %v1410
    %v1412 = vadd.f32 %v1395, %v600
    %v1413 = vmul.f32 %v1409, %v1412
    %v1414 = vadd.f32 %v379, %v1413
    %v1415 = vtanh.pop %v1414
    %v1416 = vsub.f32 %v1256, %v1415
    %v1417 = vmul.f32 %v1411, %v1416
    %v1418 = vadd.f32 %v1415, %v1417
    %1419 = vmatprep.subr.mxu0 %v393
    %1420 = vmatpush1.msra.mxu0 %v392
    %1421 = vmatprep.subr.mxu0 %v396
    %1422 = vmatpush1.msra.mxu0 %v395
    %1423 = vmatprep.subr.mxu0 %v399
    %1424 = vmatpush1.msra.mxu0 %v398
    %1425 = vmatprep.subr.mxu0 %v402
    %1426 = vmatpush1.msra.mxu0 %v401
    %1427 = vmatprep.subr.mxu0 %v405
    %1428 = vmatpush1.msra.mxu0 %v404
    %1429 = vmatprep.subr.mxu0 %v408
    %1430 = vmatpush1.msra.mxu0 %v407
    %1431 = vmatprep.subr.mxu0 %v411
    %1432 = vmatpush1.msra.mxu0 %v410
    %1433 = vmatprep.subr.mxu0 %v414
    %1434 = vmatpush1.msra.mxu0 %v413
    %1435 = vmatprep.subr.mxu0 %v417
    %1436 = vmatpush1.msra.mxu0 %v416
    %1437 = vmatprep.subr.mxu0 %v420
    %1438 = vmatpush1.msra.mxu0 %v419
    %1439 = vmatprep.subr.mxu0 %v423
    %1440 = vmatpush1.msra.mxu0 %v422
    %1441 = vmatprep.subr.mxu0 %v426
    %1442 = vmatpush1.msra.mxu0 %v425
    %1443 = vmatprep.subr.mxu0 %v429
    %1444 = vmatpush1.msra.mxu0 %v428
    %1445 = vmatprep.subr.mxu0 %v432
    %1446 = vmatpush1.msra.mxu0 %v431
    %1447 = vmatprep.subr.mxu0 %v435
    %1448 = vmatpush1.msra.mxu0 %v434
    %1449 = vmatprep.subr.mxu0 %v438
    %1450 = vmatpush1.msra.mxu0 %v437
    %1451 = vmatprep.subr.mxu0 0.0
    %1452 = vmatpush1.msra.mxu0 0.0
    %1453 = vmatprep.subr.mxu0 0.0
    %1454 = vmatpush1.msra.mxu0 0.0
    %1455 = vmatprep.subr.mxu0 0.0
    %1456 = vmatpush1.msra.mxu0 0.0
    %1457 = vmatprep.subr.mxu0 0.0
    %1458 = vmatpush1.msra.mxu0 0.0
    %1459 = vmatprep.subr.mxu0 0.0
    %1460 = vmatpush1.msra.mxu0 0.0
    %1461 = vmatprep.subr.mxu0 0.0
    %1462 = vmatpush1.msra.mxu0 0.0
    %1463 = vmatprep.subr.mxu0 0.0
    %1464 = vmatpush1.msra.mxu0 0.0
    %1465 = vmatprep.subr.mxu0 0.0
    %1466 = vmatpush1.msra.mxu0 0.0
    %1467 = vmatprep.subr.mxu0 0.0
    %1468 = vmatpush1.msra.mxu0 0.0
    %1469 = vmatprep.subr.mxu0 0.0
    %1470 = vmatpush1.msra.mxu0 0.0
    %1471 = vmatprep.subr.mxu0 0.0
    %1472 = vmatpush1.msra.mxu0 0.0
    %1473 = vmatprep.subr.mxu0 0.0
    %1474 = vmatpush1.msra.mxu0 0.0
    %1475 = vmatprep.subr.mxu0 0.0
    %1476 = vmatpush1.msra.mxu0 0.0
    %1477 = vmatprep.subr.mxu0 0.0
    %1478 = vmatpush1.msra.mxu0 0.0
    %1479 = vmatprep.subr.mxu0 0.0
    %1480 = vmatpush1.msra.mxu0 0.0
    %1481 = vmatprep.subr.mxu0 0.0
    %1482 = vmatpush1.msra.mxu0 0.0
    %1483 = vmatprep.mubr.f32.mxu0 0.0
    %1484 = vmatmul.mubr.f32.gmra.mrb[0].mxu0 %v1418
    %v1485 = vpop.f32.mrb[0].mxu0
    %v1486 = vadd.f32 0.0, %v1485
    %v1487 = vpop.f32.mrb[0].mxu0
    %v1488 = vadd.f32 0.0, %v1487
    %1489 = vdwg.mxu0
    %1490 = vmatprep.subr.mxu0 0.0
    %1491 = vmatpush1.msra.mxu0 %v394
    %1492 = vmatprep.subr.mxu0 0.0
    %1493 = vmatpush1.msra.mxu0 %v397
    %1494 = vmatprep.subr.mxu0 0.0
    %1495 = vmatpush1.msra.mxu0 %v400
    %1496 = vmatprep.subr.mxu0 0.0
    %1497 = vmatpush1.msra.mxu0 %v403
    %1498 = vmatprep.subr.mxu0 0.0
    %1499 = vmatpush1.msra.mxu0 %v406
    %1500 = vmatprep.subr.mxu0 0.0
    %1501 = vmatpush1.msra.mxu0 %v409
    %1502 = vmatprep.subr.mxu0 0.0
    %1503 = vmatpush1.msra.mxu0 %v412
    %1504 = vmatprep.subr.mxu0 0.0
    %1505 = vmatpush1.msra.mxu0 %v415
    %1506 = vmatprep.subr.mxu0 0.0
    %1507 = vmatpush1.msra.mxu0 %v418
    %1508 = vmatprep.subr.mxu0 0.0
    %1509 = vmatpush1.msra.mxu0 %v421
    %1510 = vmatprep.subr.mxu0 0.0
    %1511 = vmatpush1.msra.mxu0 %v424
    %1512 = vmatprep.subr.mxu0 0.0
    %1513 = vmatpush1.msra.mxu0 %v427
    %1514 = vmatprep.subr.mxu0 0.0
    %1515 = vmatpush1.msra.mxu0 %v430
    %1516 = vmatprep.subr.mxu0 0.0
    %1517 = vmatpush1.msra.mxu0 %v433
    %1518 = vmatprep.subr.mxu0 0.0
    %1519 = vmatpush1.msra.mxu0 %v436
    %1520 = vmatprep.subr.mxu0 0.0
    %1521 = vmatpush1.msra.mxu0 %v439
    %1522 = vmatprep.subr.mxu0 0.0
    %1523 = vmatpush1.msra.mxu0 0.0
    %1524 = vmatprep.subr.mxu0 0.0
    %1525 = vmatpush1.msra.mxu0 0.0
    %1526 = vmatprep.subr.mxu0 0.0
    %1527 = vmatpush1.msra.mxu0 0.0
    %1528 = vmatprep.subr.mxu0 0.0
    %1529 = vmatpush1.msra.mxu0 0.0
    %1530 = vmatprep.subr.mxu0 0.0
    %1531 = vmatpush1.msra.mxu0 0.0
    %1532 = vmatprep.subr.mxu0 0.0
    %1533 = vmatpush1.msra.mxu0 0.0
    %1534 = vmatprep.subr.mxu0 0.0
    %1535 = vmatpush1.msra.mxu0 0.0
    %1536 = vmatprep.subr.mxu0 0.0
    %1537 = vmatpush1.msra.mxu0 0.0
    %1538 = vmatprep.subr.mxu0 0.0
    %1539 = vmatpush1.msra.mxu0 0.0
    %1540 = vmatprep.subr.mxu0 0.0
    %1541 = vmatpush1.msra.mxu0 0.0
    %1542 = vmatprep.subr.mxu0 0.0
    %1543 = vmatpush1.msra.mxu0 0.0
    %1544 = vmatprep.subr.mxu0 0.0
    %1545 = vmatpush1.msra.mxu0 0.0
    %1546 = vmatprep.subr.mxu0 0.0
    %1547 = vmatpush1.msra.mxu0 0.0
    %1548 = vmatprep.subr.mxu0 0.0
    %1549 = vmatpush1.msra.mxu0 0.0
    %1550 = vmatprep.subr.mxu0 0.0
    %1551 = vmatpush1.msra.mxu0 0.0
    %1552 = vmatprep.subr.mxu0 0.0
    %1553 = vmatpush1.msra.mxu0 0.0
    %1554 = vmatprep.mubr.f32.mxu0 0.0
    %1555 = vmatmul.mubr.f32.gmra.mrb[0].mxu0 %v1418
    %v1556 = vpop.f32.mrb[0].mxu0
    %v1557 = vadd.f32 0.0, %v1556
    %v1558 = vpop.f32.mrb[0].mxu0
    %1559 = vdwg.mxu0
    %v1560 = vadd.f32 %v277, %v1486
    %v1561 = vadd.f32 %v279, %v1488
    %v1562 = vxor.u32 %v1560, 2147483648
    %v1563 = vxor.u32 %v1561, 2147483648
    %v1564 = vmul.f32 %v1562, 1.442695
    %v1565 = vpow.pop %v1564
    %v1566 = vmul.f32 %v1563, 1.442695
    %v1567 = vpow.pop %v1566
    %v1568 = vadd.f32 %v1565, 1.0
    %v1569 = vadd.f32 %v1567, 1.0
    %v1570 = vrcp.pop %v1568
    %v1571 = vmul.f32 1.0, %v1570
    %v1572 = vrcp.pop %v1569
    %v1573 = vmul.f32 1.0, %v1572
    %v1574 = vadd.f32 %v1557, %v600
    %v1575 = vmul.f32 %v1571, %v1574
    %v1576 = vadd.f32 %v384, %v1575
    %v1577 = vtanh.pop %v1576
    %v1578 = vsub.f32 %v1418, %v1577
    %v1579 = vmul.f32 %v1573, %v1578
    %v1580 = vadd.f32 %v1577, %v1579
    %1581 = vmatprep.subr.mxu0 %v393
    %1582 = vmatpush1.msra.mxu0 %v392
    %1583 = vmatprep.subr.mxu0 %v396
    %1584 = vmatpush1.msra.mxu0 %v395
    %1585 = vmatprep.subr.mxu0 %v399
    %1586 = vmatpush1.msra.mxu0 %v398
    %1587 = vmatprep.subr.mxu0 %v402
    %1588 = vmatpush1.msra.mxu0 %v401
    %1589 = vmatprep.subr.mxu0 %v405
    %1590 = vmatpush1.msra.mxu0 %v404
    %1591 = vmatprep.subr.mxu0 %v408
    %1592 = vmatpush1.msra.mxu0 %v407
    %1593 = vmatprep.subr.mxu0 %v411
    %1594 = vmatpush1.msra.mxu0 %v410
    %1595 = vmatprep.subr.mxu0 %v414
    %1596 = vmatpush1.msra.mxu0 %v413
    %1597 = vmatprep.subr.mxu0 %v417
    %1598 = vmatpush1.msra.mxu0 %v416
    %1599 = vmatprep.subr.mxu0 %v420
    %1600 = vmatpush1.msra.mxu0 %v419
    %1601 = vmatprep.subr.mxu0 %v423
    %1602 = vmatpush1.msra.mxu0 %v422
    %1603 = vmatprep.subr.mxu0 %v426
    %1604 = vmatpush1.msra.mxu0 %v425
    %1605 = vmatprep.subr.mxu0 %v429
    %1606 = vmatpush1.msra.mxu0 %v428
    %1607 = vmatprep.subr.mxu0 %v432
    %1608 = vmatpush1.msra.mxu0 %v431
    %1609 = vmatprep.subr.mxu0 %v435
    %1610 = vmatpush1.msra.mxu0 %v434
    %1611 = vmatprep.subr.mxu0 %v438
    %1612 = vmatpush1.msra.mxu0 %v437
    %1613 = vmatprep.subr.mxu0 0.0
    %1614 = vmatpush1.msra.mxu0 0.0
    %1615 = vmatprep.subr.mxu0 0.0
    %1616 = vmatpush1.msra.mxu0 0.0
    %1617 = vmatprep.subr.mxu0 0.0
    %1618 = vmatpush1.msra.mxu0 0.0
    %1619 = vmatprep.subr.mxu0 0.0
    %1620 = vmatpush1.msra.mxu0 0.0
    %1621 = vmatprep.subr.mxu0 0.0
    %1622 = vmatpush1.msra.mxu0 0.0
    %1623 = vmatprep.subr.mxu0 0.0
    %1624 = vmatpush1.msra.mxu0 0.0
    %1625 = vmatprep.subr.mxu0 0.0
    %1626 = vmatpush1.msra.mxu0 0.0
    %1627 = vmatprep.subr.mxu0 0.0
    %1628 = vmatpush1.msra.mxu0 0.0
    %1629 = vmatprep.subr.mxu0 0.0
    %1630 = vmatpush1.msra.mxu0 0.0
    %1631 = vmatprep.subr.mxu0 0.0
    %1632 = vmatpush1.msra.mxu0 0.0
    %1633 = vmatprep.subr.mxu0 0.0
    %1634 = vmatpush1.msra.mxu0 0.0
    %1635 = vmatprep.subr.mxu0 0.0
    %1636 = vmatpush1.msra.mxu0 0.0
    %1637 = vmatprep.subr.mxu0 0.0
    %1638 = vmatpush1.msra.mxu0 0.0
    %1639 = vmatprep.subr.mxu0 0.0
    %1640 = vmatpush1.msra.mxu0 0.0
    %1641 = vmatprep.subr.mxu0 0.0
    %1642 = vmatpush1.msra.mxu0 0.0
    %1643 = vmatprep.subr.mxu0 0.0
    %1644 = vmatpush1.msra.mxu0 0.0
    %1645 = vmatprep.mubr.f32.mxu0 0.0
    %1646 = vmatmul.mubr.f32.gmra.mrb[0].mxu0 %v1580
    %v1647 = vpop.f32.mrb[0].mxu0
    %v1648 = vadd.f32 0.0, %v1647
    %v1649 = vpop.f32.mrb[0].mxu0
    %v1650 = vadd.f32 0.0, %v1649
    %1651 = vdwg.mxu0
    %1652 = vmatprep.subr.mxu0 0.0
    %1653 = vmatpush1.msra.mxu0 %v394
    %1654 = vmatprep.subr.mxu0 0.0
    %1655 = vmatpush1.msra.mxu0 %v397
    %1656 = vmatprep.subr.mxu0 0.0
    %1657 = vmatpush1.msra.mxu0 %v400
    %1658 = vmatprep.subr.mxu0 0.0
    %1659 = vmatpush1.msra.mxu0 %v403
    %1660 = vmatprep.subr.mxu0 0.0
    %1661 = vmatpush1.msra.mxu0 %v406
    %1662 = vmatprep.subr.mxu0 0.0
    %1663 = vmatpush1.msra.mxu0 %v409
    %1664 = vmatprep.subr.mxu0 0.0
    %1665 = vmatpush1.msra.mxu0 %v412
    %1666 = vmatprep.subr.mxu0 0.0
    %1667 = vmatpush1.msra.mxu0 %v415
    %1668 = vmatprep.subr.mxu0 0.0
    %1669 = vmatpush1.msra.mxu0 %v418
    %1670 = vmatprep.subr.mxu0 0.0
    %1671 = vmatpush1.msra.mxu0 %v421
    %1672 = vmatprep.subr.mxu0 0.0
    %1673 = vmatpush1.msra.mxu0 %v424
    %1674 = vmatprep.subr.mxu0 0.0
    %1675 = vmatpush1.msra.mxu0 %v427
    %1676 = vmatprep.subr.mxu0 0.0
    %1677 = vmatpush1.msra.mxu0 %v430
    %1678 = vmatprep.subr.mxu0 0.0
    %1679 = vmatpush1.msra.mxu0 %v433
    %1680 = vmatprep.subr.mxu0 0.0
    %1681 = vmatpush1.msra.mxu0 %v436
    %1682 = vmatprep.subr.mxu0 0.0
    %1683 = vmatpush1.msra.mxu0 %v439
    %1684 = vmatprep.subr.mxu0 0.0
    %1685 = vmatpush1.msra.mxu0 0.0
    %1686 = vmatprep.subr.mxu0 0.0
    %1687 = vmatpush1.msra.mxu0 0.0
    %1688 = vmatprep.subr.mxu0 0.0
    %1689 = vmatpush1.msra.mxu0 0.0
    %1690 = vmatprep.subr.mxu0 0.0
    %1691 = vmatpush1.msra.mxu0 0.0
    %1692 = vmatprep.subr.mxu0 0.0
    %1693 = vmatpush1.msra.mxu0 0.0
    %1694 = vmatprep.subr.mxu0 0.0
    %1695 = vmatpush1.msra.mxu0 0.0
    %1696 = vmatprep.subr.mxu0 0.0
    %1697 = vmatpush1.msra.mxu0 0.0
    %1698 = vmatprep.subr.mxu0 0.0
    %1699 = vmatpush1.msra.mxu0 0.0
    %1700 = vmatprep.subr.mxu0 0.0
    %1701 = vmatpush1.msra.mxu0 0.0
    %1702 = vmatprep.subr.mxu0 0.0
    %1703 = vmatpush1.msra.mxu0 0.0
    %1704 = vmatprep.subr.mxu0 0.0
    %1705 = vmatpush1.msra.mxu0 0.0
    %1706 = vmatprep.subr.mxu0 0.0
    %1707 = vmatpush1.msra.mxu0 0.0
    %1708 = vmatprep.subr.mxu0 0.0
    %1709 = vmatpush1.msra.mxu0 0.0
    %1710 = vmatprep.subr.mxu0 0.0
    %1711 = vmatpush1.msra.mxu0 0.0
    %1712 = vmatprep.subr.mxu0 0.0
    %1713 = vmatpush1.msra.mxu0 0.0
    %1714 = vmatprep.subr.mxu0 0.0
    %1715 = vmatpush1.msra.mxu0 0.0
    %1716 = vmatprep.mubr.f32.mxu0 0.0
    %1717 = vmatmul.mubr.f32.gmra.mrb[0].mxu0 %v1580
    %v1718 = vpop.f32.mrb[0].mxu0
    %v1719 = vadd.f32 0.0, %v1718
    %v1720 = vpop.f32.mrb[0].mxu0
    %1721 = vdwg.mxu0
    %v1722 = vadd.f32 %v283, %v1648
    %v1723 = vadd.f32 %v285, %v1650
    %v1724 = vxor.u32 %v1722, 2147483648
    %v1725 = vxor.u32 %v1723, 2147483648
    %v1726 = vmul.f32 %v1724, 1.442695
    %v1727 = vpow.pop %v1726
    %v1728 = vmul.f32 %v1725, 1.442695
    %v1729 = vpow.pop %v1728
    %v1730 = vadd.f32 %v1727, 1.0
    %v1731 = vadd.f32 %v1729, 1.0
    %v1732 = vrcp.pop %v1730
    %v1733 = vmul.f32 1.0, %v1732
    %v1734 = vrcp.pop %v1731
    %v1735 = vmul.f32 1.0, %v1734
    %v1736 = vadd.f32 %v1719, %v600
    %v1737 = vmul.f32 %v1733, %v1736
    %v1738 = vadd.f32 %v389, %v1737
    %v1739 = vtanh.pop %v1738
    %v1740 = vsub.f32 %v1580, %v1739
    %v1741 = vmul.f32 %v1735, %v1740
    %v1742 = vadd.f32 %v1739, %v1741
    %v1743 = vld [vmem:[#allocation8] sm:$0xff]
    %v1744 = vld [vmem:[#allocation8 + $0x8] sm:$0xff]
    %v1745 = vld [vmem:[#allocation8 + $0x10] sm:$0xff]
    %v1746 = vld [vmem:[#allocation8 + $0x18] sm:$0xff]
    %v1747 = vld [vmem:[#allocation8 + $0x20] sm:$0xff]
    %v1748 = vld [vmem:[#allocation8 + $0x28] sm:$0xff]
    %v1749 = vld [vmem:[#allocation8 + $0x30] sm:$0xff]
    %v1750 = vld [vmem:[#allocation8 + $0x38] sm:$0xff]
    %v1751 = vld [vmem:[#allocation8 + $0x40] sm:$0xff]
    %v1752 = vld [vmem:[#allocation8 + $0x48] sm:$0xff]
    %v1753 = vld [vmem:[#allocation8 + $0x50] sm:$0xff]
    %v1754 = vld [vmem:[#allocation8 + $0x58] sm:$0xff]
    %v1755 = vld [vmem:[#allocation8 + $0x60] sm:$0xff]
    %v1756 = vld [vmem:[#allocation8 + $0x68] sm:$0xff]
    %v1757 = vld [vmem:[#allocation8 + $0x70] sm:$0xff]
    %v1758 = vld [vmem:[#allocation8 + $0x78] sm:$0xff]
    %v1759 = vld [vmem:[%s6] sm:$0x1]
    %v1761 = vlaneseq
    %v1762 = vshrl.u32 %v1761, 7
    %v1763 = vsub.s32 0, %v1762
    %v1764 = vrot.slane %v1759, %v1763
    %1766 = vmatprep.subr.mxu0 0.0
    %1767 = vmatpush1.msra.mxu0 %v1743
    %1768 = vmatprep.subr.mxu0 0.0
    %1769 = vmatpush1.msra.mxu0 %v1744
    %1770 = vmatprep.subr.mxu0 0.0
    %1771 = vmatpush1.msra.mxu0 %v1745
    %1772 = vmatprep.subr.mxu0 0.0
    %1773 = vmatpush1.msra.mxu0 %v1746
    %1774 = vmatprep.subr.mxu0 0.0
    %1775 = vmatpush1.msra.mxu0 %v1747
    %1776 = vmatprep.subr.mxu0 0.0
    %1777 = vmatpush1.msra.mxu0 %v1748
    %1778 = vmatprep.subr.mxu0 0.0
    %1779 = vmatpush1.msra.mxu0 %v1749
    %1780 = vmatprep.subr.mxu0 0.0
    %1781 = vmatpush1.msra.mxu0 %v1750
    %1782 = vmatprep.subr.mxu0 0.0
    %1783 = vmatpush1.msra.mxu0 %v1751
    %1784 = vmatprep.subr.mxu0 0.0
    %1785 = vmatpush1.msra.mxu0 %v1752
    %1786 = vmatprep.subr.mxu0 0.0
    %1787 = vmatpush1.msra.mxu0 %v1753
    %1788 = vmatprep.subr.mxu0 0.0
    %1789 = vmatpush1.msra.mxu0 %v1754
    %1790 = vmatprep.subr.mxu0 0.0
    %1791 = vmatpush1.msra.mxu0 %v1755
    %1792 = vmatprep.subr.mxu0 0.0
    %1793 = vmatpush1.msra.mxu0 %v1756
    %1794 = vmatprep.subr.mxu0 0.0
    %1795 = vmatpush1.msra.mxu0 %v1757
    %1796 = vmatprep.subr.mxu0 0.0
    %1797 = vmatpush1.msra.mxu0 %v1758
    %1798 = vmatprep.subr.mxu0 0.0
    %1799 = vmatpush1.msra.mxu0 0.0
    %1800 = vmatprep.subr.mxu0 0.0
    %1801 = vmatpush1.msra.mxu0 0.0
    %1802 = vmatprep.subr.mxu0 0.0
    %1803 = vmatpush1.msra.mxu0 0.0
    %1804 = vmatprep.subr.mxu0 0.0
    %1805 = vmatpush1.msra.mxu0 0.0
    %1806 = vmatprep.subr.mxu0 0.0
    %1807 = vmatpush1.msra.mxu0 0.0
    %1808 = vmatprep.subr.mxu0 0.0
    %1809 = vmatpush1.msra.mxu0 0.0
    %1810 = vmatprep.subr.mxu0 0.0
    %1811 = vmatpush1.msra.mxu0 0.0
    %1812 = vmatprep.subr.mxu0 0.0
    %1813 = vmatpush1.msra.mxu0 0.0
    %1814 = vmatprep.subr.mxu0 0.0
    %1815 = vmatpush1.msra.mxu0 0.0
    %1816 = vmatprep.subr.mxu0 0.0
    %1817 = vmatpush1.msra.mxu0 0.0
    %1818 = vmatprep.subr.mxu0 0.0
    %1819 = vmatpush1.msra.mxu0 0.0
    %1820 = vmatprep.subr.mxu0 0.0
    %1821 = vmatpush1.msra.mxu0 0.0
    %1822 = vmatprep.subr.mxu0 0.0
    %1823 = vmatpush1.msra.mxu0 0.0
    %1824 = vmatprep.subr.mxu0 0.0
    %1825 = vmatpush1.msra.mxu0 0.0
    %1826 = vmatprep.subr.mxu0 0.0
    %1827 = vmatpush1.msra.mxu0 0.0
    %1828 = vmatprep.subr.mxu0 0.0
    %1829 = vmatpush1.msra.mxu0 0.0
    %1830 = vmatprep.mubr.f32.mxu0 0.0
    %1831 = vmatmul.mubr.f32.gmra.mrb[0].mxu0 %v1742
    %v1832 = vpop.f32.mrb[0].mxu0
    %v1833 = vadd.f32 %v1764, %v1832
    %v1834 = vpop.f32.mrb[0].mxu0
    %1835 = vdwg.mxu0
    %v1836 = vmax.f32 %v1833, 0.0
    %v1837 = vld [vmem:[#allocation10] sm:$0xff]
    %v1838 = vld [vmem:[#allocation10 + $0x8] sm:$0xff]
    %v1839 = vld [vmem:[#allocation10 + $0x10] sm:$0xff]
    %v1840 = vld [vmem:[#allocation10 + $0x18] sm:$0xff]
    %v1841 = vld [vmem:[#allocation10 + $0x20] sm:$0xff]
    %v1842 = vld [vmem:[#allocation10 + $0x28] sm:$0xff]
    %v1843 = vld [vmem:[#allocation10 + $0x30] sm:$0xff]
    %v1844 = vld [vmem:[#allocation10 + $0x38] sm:$0xff]
    %v1845 = vld [vmem:[#allocation10 + $0x40] sm:$0xff]
    %v1846 = vld [vmem:[#allocation10 + $0x48] sm:$0xff]
    %v1847 = vld [vmem:[#allocation10 + $0x50] sm:$0xff]
    %v1848 = vld [vmem:[#allocation10 + $0x58] sm:$0xff]
    %v1849 = vld [vmem:[#allocation10 + $0x60] sm:$0xff]
    %v1850 = vld [vmem:[#allocation10 + $0x68] sm:$0xff]
    %v1851 = vld [vmem:[#allocation10 + $0x70] sm:$0xff]
    %v1852 = vld [vmem:[#allocation10 + $0x78] sm:$0xff]
    %v1853 = vld [vmem:[%s8] sm:$0x1]
    %v1855 = vlaneseq
    %v1856 = vshrl.u32 %v1855, 7
    %v1857 = vsub.s32 0, %v1856
    %v1858 = vrot.slane %v1853, %v1857
    %1860 = vmatprep.subr.mxu0 0.0
    %1861 = vmatpush1.msra.mxu0 %v1837
    %1862 = vmatprep.subr.mxu0 0.0
    %1863 = vmatpush1.msra.mxu0 %v1838
    %1864 = vmatprep.subr.mxu0 0.0
    %1865 = vmatpush1.msra.mxu0 %v1839
    %1866 = vmatprep.subr.mxu0 0.0
    %1867 = vmatpush1.msra.mxu0 %v1840
    %1868 = vmatprep.subr.mxu0 0.0
    %1869 = vmatpush1.msra.mxu0 %v1841
    %1870 = vmatprep.subr.mxu0 0.0
    %1871 = vmatpush1.msra.mxu0 %v1842
    %1872 = vmatprep.subr.mxu0 0.0
    %1873 = vmatpush1.msra.mxu0 %v1843
    %1874 = vmatprep.subr.mxu0 0.0
    %1875 = vmatpush1.msra.mxu0 %v1844
    %1876 = vmatprep.subr.mxu0 0.0
    %1877 = vmatpush1.msra.mxu0 %v1845
    %1878 = vmatprep.subr.mxu0 0.0
    %1879 = vmatpush1.msra.mxu0 %v1846
    %1880 = vmatprep.subr.mxu0 0.0
    %1881 = vmatpush1.msra.mxu0 %v1847
    %1882 = vmatprep.subr.mxu0 0.0
    %1883 = vmatpush1.msra.mxu0 %v1848
    %1884 = vmatprep.subr.mxu0 0.0
    %1885 = vmatpush1.msra.mxu0 %v1849
    %1886 = vmatprep.subr.mxu0 0.0
    %1887 = vmatpush1.msra.mxu0 %v1850
    %1888 = vmatprep.subr.mxu0 0.0
    %1889 = vmatpush1.msra.mxu0 %v1851
    %1890 = vmatprep.subr.mxu0 0.0
    %1891 = vmatpush1.msra.mxu0 %v1852
    %1892 = vmatprep.subr.mxu0 0.0
    %1893 = vmatpush1.msra.mxu0 0.0
    %1894 = vmatprep.subr.mxu0 0.0
    %1895 = vmatpush1.msra.mxu0 0.0
    %1896 = vmatprep.subr.mxu0 0.0
    %1897 = vmatpush1.msra.mxu0 0.0
    %1898 = vmatprep.subr.mxu0 0.0
    %1899 = vmatpush1.msra.mxu0 0.0
    %1900 = vmatprep.subr.mxu0 0.0
    %1901 = vmatpush1.msra.mxu0 0.0
    %1902 = vmatprep.subr.mxu0 0.0
    %1903 = vmatpush1.msra.mxu0 0.0
    %1904 = vmatprep.subr.mxu0 0.0
    %1905 = vmatpush1.msra.mxu0 0.0
    %1906 = vmatprep.subr.mxu0 0.0
    %1907 = vmatpush1.msra.mxu0 0.0
    %1908 = vmatprep.subr.mxu0 0.0
    %1909 = vmatpush1.msra.mxu0 0.0
    %1910 = vmatprep.subr.mxu0 0.0
    %1911 = vmatpush1.msra.mxu0 0.0
    %1912 = vmatprep.subr.mxu0 0.0
    %1913 = vmatpush1.msra.mxu0 0.0
    %1914 = vmatprep.subr.mxu0 0.0
    %1915 = vmatpush1.msra.mxu0 0.0
    %1916 = vmatprep.subr.mxu0 0.0
    %1917 = vmatpush1.msra.mxu0 0.0
    %1918 = vmatprep.subr.mxu0 0.0
    %1919 = vmatpush1.msra.mxu0 0.0
    %1920 = vmatprep.subr.mxu0 0.0
    %1921 = vmatpush1.msra.mxu0 0.0
    %1922 = vmatprep.subr.mxu0 0.0
    %1923 = vmatpush1.msra.mxu0 0.0
    %1924 = vmatprep.mubr.f32.mxu0 0.0
    %1925 = vmatmul.mubr.f32.gmra.mrb[0].mxu0 %v1836
    %v1926 = vpop.f32.mrb[0].mxu0
    %v1927 = vadd.f32 %v1858, %v1926
    %v1928 = vpop.f32.mrb[0].mxu0
    %1929 = vdwg.mxu0
    %1930 = vst [vmem:[#allocation11] sm:$0xff] %v1927
    // Predicated region
    $region58: #{tpu_custom_call.1} parent=1 // pred_check
      _
    $region59: #{tpu_custom_call.1} parent=1 // pred_check_branch
      %1932 = sbr.rel (0) target = $region61
    $region60: #{tpu_custom_call.1} parent=1 // pred_region
      %s1934 = ssub.s32 128, 128
      %1935 = vsyncadd [#allocation4], %s1934
      %s1937 = sshll.u32 [#allocation11], 4
      %s1938 = int_to_ptr.vmem [resolvable:$true] %s1937
      %1940 = dma.vmem_to_hbm [thread:$0]  %s1938, 128, %s9, [#allocation4]
    $region61: #{tpu_custom_call.1} parent=1 // pred_fallthru
      _
    // Predicated region
    $region62: #{tpu_custom_call.1} parent=1 // pred_check
      _
    $region63: #{tpu_custom_call.1} parent=1 // pred_check_branch
      %1942 = sbr.rel (0) target = $region65
    $region64: #{tpu_custom_call.1} parent=1 // pred_region
      %1943 = dma.done [#allocation4], 128
    $region65: #{tpu_custom_call.1} parent=1 // pred_fallthru
      _
    %1944 = vsyncpa [#allocation3], 1
    %1945 = vsyncpa [#allocation6], 1
    %1946 = vsyncpa [#allocation9], 1
    %1947 = vsyncpa [#allocation4], 1

</llo_original>
